<compile_context>
chip_gen: v6e
topology: v6e:2x2x1
jax: 0.10.0
libtpu: 0.0.40
codegen_flags: <defaults>
</compile_context>

<pallas_src>
import functools

import jax
import jax.numpy as jnp
from jax.experimental import pallas as pl
from jax.experimental.pallas import tpu as pltpu


def _mm(a, w_ref):
    """MXU matmul: cast activation to the (bf16) weight dtype, accumulate in f32."""
    return jnp.dot(a.astype(w_ref.dtype), w_ref[...],
                   preferred_element_type=jnp.float32)


# ----------------------------------------------------------------------------------
# Fused kernel: bidirectional LSTM recurrence + additive self-attention + MLP head
# ----------------------------------------------------------------------------------
def _bilstm_attn_mlp_kernel(x_ref, wih_ref, whh_ref, b_ref,
                            whf_ref, whb_ref, wzf_ref, wzb_ref, v_ref,
                            w1f_ref, w1b_ref, b1_ref, w2_ref, b2_ref,
                            out_ref,
                            xp_seq, hf_seq, hb_seq):
    B = out_ref.shape[0]
    SB = x_ref.shape[0]
    S = SB // B
    H = whh_ref.shape[0] // 2          # hidden_dim
    H2 = 2 * H

    # ---- hoisted input projection for BOTH directions: ONE (S*B,2E)x(2E,8H) matmul ----
    # x_ref row block t = [x[t] | x[S-1-t]]  (built once in the XLA wrapper, not here).
    # Goes through VMEM scratch so xp is not live in vregs across the unrolled loop.
    xp_seq[...] = _mm(x_ref[...], wih_ref) + b_ref[...]

    # ---- fused fwd+bwd LSTM recurrence, fully unrolled (init_hidden(): zeros) ----------
    # state = [h_fwd | h_bwd] (B,2H); gate columns packed [i_f,i_b|f_f,f_b|o_f,o_b|g_f,g_b]
    h_state = jnp.zeros((B, H2), jnp.float32)
    c_state = jnp.zeros((B, H2), jnp.float32)
    for t in range(S):
        gates = xp_seq[pl.ds(t * B, B), :] + _mm(h_state, whh_ref)       # (B, 8H)
        sig = jax.nn.sigmoid(gates[:, :3 * H2])    # i, f, o for both dirs (contiguous)
        g_g = jnp.tanh(gates[:, 3 * H2:])          # cell candidates, both dirs
        i_g = sig[:, :H2]
        f_g = sig[:, H2:2 * H2]
        o_g = sig[:, 2 * H2:]
        c_state = f_g * c_state + i_g * g_g
        h_state = o_g * jnp.tanh(c_state)
        # per-direction scratch, stored in SEQUENCE order (fwd loop step t covers seq
        # position t, bwd loop step t covers seq position S-1-t) -> no splicing later.
        hf_seq[pl.ds(t * B, B), :] = h_state[:, :H]
        hb_seq[pl.ds((S - 1 - t) * B, B), :] = h_state[:, H:]

    # ---- additive self-attention (direction-split weights, no [fwd|bwd] splices) --------
    hproj = _mm(hf_seq[...], whf_ref) + _mm(hb_seq[...], whb_ref)        # (S*B, V)
    zf = hf_seq[pl.ds((S - 1) * B, B), :]                                # z = h[-1]
    zb = hb_seq[pl.ds((S - 1) * B, B), :]
    zproj = _mm(zf, wzf_ref) + _mm(zb, wzb_ref)                          # (B, V)

    # per-position scores, block-wise (no (B,S) transpose, no zproj tiling)
    sc = []
    for t in range(S):
        u_t = jnp.tanh(hproj[t * B:(t + 1) * B, :] + zproj)              # (B, V)
        sc.append(jnp.sum(u_t * v_ref[...], axis=-1, keepdims=True))     # (B, 1)
    m = sc[0]
    for t in range(1, S):
        m = jnp.maximum(m, sc[t])

    # softmax over the sequence fused with the attention-weighted sum, per direction
    den = jnp.zeros((B, 1), jnp.float32)
    num_f = jnp.zeros((B, H), jnp.float32)
    num_b = jnp.zeros((B, H), jnp.float32)
    for t in range(S):
        w_t = jnp.exp(sc[t] - m)                                         # (B, 1)
        den = den + w_t
        num_f = num_f + w_t * hf_seq[pl.ds(t * B, B), :]
        num_b = num_b + w_t * hb_seq[pl.ds(t * B, B), :]
    inv = 1.0 / den
    hsum_f = num_f * inv                                                 # (B, H)
    hsum_b = num_b * inv
    # F.dropout(..., training=False) -> identity (inference mode)

    # ---- MLP head (first layer split by direction -> zero concats in the kernel) --------
    hid = jnp.tanh(_mm(hsum_f, w1f_ref) + _mm(hsum_b, w1b_ref) + b1_ref[...])
    # second dropout in MLP -> identity (inference mode)
    logits = _mm(hid, w2_ref) + b2_ref[...]
    out_ref[...] = jax.nn.softmax(logits, axis=1)


# ----------------------------------------------------------------------------------
# Weight packing (PyTorch nn.LSTM layout -> fused block-diagonal, gate-interleaved)
# ----------------------------------------------------------------------------------
def _gate_cols(w, h):
    """PyTorch (4H, in) rows [i,f,g,o] -> (in, 4H) columns reordered [i, f, o, g]."""
    return jnp.concatenate(
        [w[0 * h:1 * h].T, w[1 * h:2 * h].T, w[3 * h:4 * h].T, w[2 * h:3 * h].T], axis=1)


def _gate_bias(b_ih, b_hh, h):
    b = b_ih + b_hh
    return jnp.concatenate([b[0 * h:1 * h], b[1 * h:2 * h], b[3 * h:4 * h], b[2 * h:3 * h]])


def _interleave_dirs(cols_f, cols_b, h):
    """(rows,4H) fwd/bwd gate blocks [i,f,o,g] -> (rows,8H) [i_f,i_b,...,g_f,g_b]."""
    parts = []
    for k in range(4):
        parts.append(cols_f[:, k * h:(k + 1) * h])
        parts.append(cols_b[:, k * h:(k + 1) * h])
    return jnp.concatenate(parts, axis=1)


def pack_params(raw, *, embedding_dim, hidden_dim):
    E, H = embedding_dim, hidden_dim
    wih_f = _gate_cols(raw['w_ih_f'], H)           # (E, 4H)
    wih_b = _gate_cols(raw['w_ih_b'], H)
    whh_f = _gate_cols(raw['w_hh_f'], H)           # (H, 4H)
    whh_b = _gate_cols(raw['w_hh_b'], H)
    zE = jnp.zeros((E, 4 * H), jnp.float32)
    zH = jnp.zeros((H, 4 * H), jnp.float32)
    # block-diagonal: rows [0:E]/[0:H] only feed forward gate columns, rows [E:2E]/[H:2H]
    # only feed backward gate columns
    w_ih = _interleave_dirs(jnp.concatenate([wih_f, zE], axis=0),
                            jnp.concatenate([zE, wih_b], axis=0), H)     # (2E, 8H)
    w_hh = _interleave_dirs(jnp.concatenate([whh_f, zH], axis=0),
                            jnp.concatenate([zH, whh_b], axis=0), H)     # (2H, 8H)
    b_f = _gate_bias(raw['b_ih_f'], raw['b_hh_f'], H)[None, :]           # (1, 4H)
    b_b = _gate_bias(raw['b_ih_b'], raw['b_hh_b'], H)[None, :]
    b = _interleave_dirs(b_f, b_b, H)                                    # (1, 8H)
    bf16 = jnp.bfloat16
    return {
        'emb': raw['emb'],
        # bf16 MXU operands; biases / v stay f32 (added to f32 accumulators)
        'w_ih': w_ih.astype(bf16), 'w_hh': w_hh.astype(bf16), 'b': b.astype(jnp.float32),
        'wh_f': raw['wh'][:H].astype(bf16), 'wh_b': raw['wh'][H:].astype(bf16),
        'wz_f': raw['wz'][:H].astype(bf16), 'wz_b': raw['wz'][H:].astype(bf16),
        'v': raw['v'].astype(jnp.float32),
        'w1_f': raw['w1'][:H].astype(bf16), 'w1_b': raw['w1'][H:].astype(bf16),
        'b1': raw['b1'].astype(jnp.float32),
        'w2': raw['w2'].astype(bf16), 'b2': raw['b2'].astype(jnp.float32),
    }


# ----------------------------------------------------------------------------------
# Full forward (embedding gather + layout plumbing in XLA glue, the rest in one kernel)
# ----------------------------------------------------------------------------------
@functools.partial(jax.jit, static_argnames=("label_size",))
def bilstm_baseline_forward(text_input, p, *, label_size):
    S, B = text_input.shape
    H = p['w_hh'].shape[0] // 2
    x = jnp.take(p['emb'], text_input, axis=0).astype(jnp.float32)       # (S, B, E)
    # layout plumbing done ONCE in XLA (free vs. in-kernel VMEM copies):
    # row block t of x_flat = [x[t] | x[S-1-t]] (fwd / bwd inputs for fused loop step t)
    x_flat = jnp.concatenate([x, x[::-1]], axis=-1).reshape(S * B, -1)
    x_flat = x_flat.astype(jnp.bfloat16)                                 # MXU-native

    args = (x_flat, p['w_ih'], p['w_hh'], p['b'],
            p['wh_f'], p['wh_b'], p['wz_f'], p['wz_b'], p['v'],
            p['w1_f'], p['w1_b'], p['b1'], p['w2'], p['b2'])

    E2 = x_flat.shape[1]
    H2, H8, V, L = 2 * H, 8 * H, p['v'].shape[1], label_size
    flops = (2 * S * B * (E2 * H8 + H2 * H8 + H2 * V)
             + 2 * B * (H2 * V + H2 * H2 + H2 * L))
    transcendentals = S * B * (H8 + H2 + V + 1) + B * (H2 + L)
    bytes_accessed = int(sum(a.size * a.dtype.itemsize for a in args) + B * L * 4)

    vmem = pltpu.MemorySpace.VMEM
    return pl.pallas_call(
        _bilstm_attn_mlp_kernel,
        out_shape=jax.ShapeDtypeStruct((B, label_size), jnp.float32),
        in_specs=[pl.BlockSpec(memory_space=vmem)] * len(args),
        out_specs=pl.BlockSpec(memory_space=vmem),
        scratch_shapes=[pltpu.VMEM((S * B, H8), jnp.float32),   # xp_seq (input projection)
                        pltpu.VMEM((S * B, H), jnp.float32),    # hf_seq (fwd hidden, seq order)
                        pltpu.VMEM((S * B, H), jnp.float32)],   # hb_seq (bwd hidden, seq order)
        compiler_params=pltpu.CompilerParams(vmem_limit_bytes=32 * 1024 * 1024),
        cost_estimate=pl.CostEstimate(flops=flops,
                                      transcendentals=transcendentals,
                                      bytes_accessed=bytes_accessed),
    )(*args)


if __name__ == "__main__":
    S, B = 8, 2
    vocab_size, E, H, V_DIM, L = 50, 16, 32, 16, 4

    key = jax.random.PRNGKey(0)
    keys = jax.random.split(key, 20)

    def init(k, shape):
        return (jax.random.normal(k, shape, jnp.float32) * 0.1).astype(jnp.float32)

    # raw parameters in PyTorch layout (nn.LSTM weights are (4H, in), gate order i,f,g,o)
    raw = {
        'emb': init(keys[0], (vocab_size, E)),                 # pretrained_vec (frozen)
        'w_ih_f': init(keys[1], (4 * H, E)),
        'w_hh_f': init(keys[2], (4 * H, H)),
        'b_ih_f': init(keys[3], (4 * H,)),
        'b_hh_f': init(keys[4], (4 * H,)),
        'w_ih_b': init(keys[5], (4 * H, E)),
        'w_hh_b': init(keys[6], (4 * H, H)),
        'b_ih_b': init(keys[7], (4 * H,)),
        'b_hh_b': init(keys[8], (4 * H,)),
        # SelfAttention (additive), stored input-major for matmul
        'wh': init(keys[9], (2 * H, V_DIM)),
        'wz': init(keys[10], (2 * H, V_DIM)),
        'v':  init(keys[11], (1, V_DIM)),
        # MLP head (nn.Linear weight.T layout)
        'w1': init(keys[12], (2 * H, 2 * H)),
        'b1': init(keys[13], (1, 2 * H)),
        'w2': init(keys[14], (2 * H, L)),
        'b2': init(keys[15], (1, L)),
    }
    params = pack_params(raw, embedding_dim=E, hidden_dim=H)

    text_input = jax.random.randint(jax.random.PRNGKey(1), (S, B), 0, vocab_size,
                                    dtype=jnp.int32)

    out = bilstm_baseline_forward(text_input, params, label_size=L)
    out = jax.block_until_ready(out)

    assert out.shape == (B, L)
    # each row is a softmax distribution over labels
    assert bool(jnp.all(jnp.abs(jnp.sum(out, axis=1) - 1.0) < 1e-4))
    print("KERNEL_OK")
</pallas_src>

<mosaic_0001>
module attributes {stable_mosaic.version = 11 : i64} {
  func.func @_bilstm_attn_mlp_kernel(%arg0: memref<16x32xbf16, #tpu.memory_space<vmem>>, %arg1: memref<32x256xbf16, #tpu.memory_space<vmem>>, %arg2: memref<64x256xbf16, #tpu.memory_space<vmem>>, %arg3: memref<1x256xf32, #tpu.memory_space<vmem>>, %arg4: memref<32x16xbf16, #tpu.memory_space<vmem>>, %arg5: memref<32x16xbf16, #tpu.memory_space<vmem>>, %arg6: memref<32x16xbf16, #tpu.memory_space<vmem>>, %arg7: memref<32x16xbf16, #tpu.memory_space<vmem>>, %arg8: memref<1x16xf32, #tpu.memory_space<vmem>>, %arg9: memref<32x64xbf16, #tpu.memory_space<vmem>>, %arg10: memref<32x64xbf16, #tpu.memory_space<vmem>>, %arg11: memref<1x64xf32, #tpu.memory_space<vmem>>, %arg12: memref<64x4xbf16, #tpu.memory_space<vmem>>, %arg13: memref<1x4xf32, #tpu.memory_space<vmem>>, %arg14: memref<2x4xf32, #tpu.memory_space<vmem>>, %arg15: memref<16x256xf32, #tpu.memory_space<vmem>>, %arg16: memref<16x32xf32, #tpu.memory_space<vmem>>, %arg17: memref<16x32xf32, #tpu.memory_space<vmem>>) attributes {dimension_semantics = [], scalar_prefetch = 0 : i64, scratch_operands = 3 : i64, tpu.core_type = #tpu.core_type<tc>} {
    %c0 = arith.constant 0 : index
    %c0_0 = arith.constant 0 : index
    %0 = vector.load %arg0[%c0, %c0_0] : memref<16x32xbf16, #tpu.memory_space<vmem>>, vector<16x32xbf16>
    %c0_1 = arith.constant 0 : index
    %c0_2 = arith.constant 0 : index
    %1 = vector.load %arg1[%c0_1, %c0_2] : memref<32x256xbf16, #tpu.memory_space<vmem>>, vector<32x256xbf16>
    %cst = arith.constant dense<0.000000e+00> : vector<16x256xf32>
    %2 = tpu.matmul %0, %1, %cst {dimension_numbers = #tpu.dot_dimension_numbers<[1], [0], [0], [1], [0, 0, 1, 1], [], []>} : vector<16x32xbf16>, vector<32x256xbf16>, vector<16x256xf32> -> vector<16x256xf32>
    %c0_3 = arith.constant 0 : index
    %c0_4 = arith.constant 0 : index
    %3 = vector.load %arg3[%c0_3, %c0_4] : memref<1x256xf32, #tpu.memory_space<vmem>>, vector<1x256xf32>
    %4 = vector.broadcast %3 : vector<1x256xf32> to vector<16x256xf32>
    %5 = arith.addf %2, %4 : vector<16x256xf32>
    %c0_5 = arith.constant 0 : index
    %c0_6 = arith.constant 0 : index
    %6 = vector.load %arg15[%c0_5, %c0_6] : memref<16x256xf32, #tpu.memory_space<vmem>>, vector<16x256xf32>
    tpu.vector_store %arg15[%c0_5, %c0_6], %5 {strides = array<i32>} : memref<16x256xf32, #tpu.memory_space<vmem>>, vector<16x256xf32>,
    %cst_7 = arith.constant 0.000000e+00 : f32
    %7 = vector.broadcast %cst_7 : f32 to vector<2x64xf32>
    %cst_8 = arith.constant 0.000000e+00 : f32
    %8 = vector.broadcast %cst_8 : f32 to vector<2x64xf32>
    %c0_9 = arith.constant 0 : index
    %c0_10 = arith.constant 0 : index
    %9 = vector.load %arg15[%c0_9, %c0_10] : memref<16x256xf32, #tpu.memory_space<vmem>>, vector<2x256xf32>
    %10 = arith.truncf %7 : vector<2x64xf32> to vector<2x64xbf16>
    %c0_11 = arith.constant 0 : index
    %c0_12 = arith.constant 0 : index
    %11 = vector.load %arg2[%c0_11, %c0_12] : memref<64x256xbf16, #tpu.memory_space<vmem>>, vector<64x256xbf16>
    %cst_13 = arith.constant dense<0.000000e+00> : vector<2x256xf32>
    %12 = tpu.matmul %10, %11, %cst_13 {dimension_numbers = #tpu.dot_dimension_numbers<[1], [0], [0], [1], [0, 0, 1, 1], [], []>} : vector<2x64xbf16>, vector<64x256xbf16>, vector<2x256xf32> -> vector<2x256xf32>
    %13 = arith.addf %9, %12 : vector<2x256xf32>
    %14 = vector.extract_strided_slice %13 {offsets = [0, 0], sizes = [2, 192], strides = [1, 1]} : vector<2x256xf32> to vector<2x192xf32>
    %15 = arith.negf %14 : vector<2x192xf32>
    %16 = math.exp %15 : vector<2x192xf32>
    %cst_14 = arith.constant 1.000000e+00 : f32
    %17 = vector.broadcast %cst_14 : f32 to vector<2x192xf32>
    %18 = arith.addf %17, %16 : vector<2x192xf32>
    %19 = arith.divf %17, %18 : vector<2x192xf32>
    %20 = vector.extract_strided_slice %13 {offsets = [0, 192], sizes = [2, 64], strides = [1, 1]} : vector<2x256xf32> to vector<2x64xf32>
    %21 = math.tanh %20 : vector<2x64xf32>
    %22 = vector.extract_strided_slice %19 {offsets = [0, 0], sizes = [2, 64], strides = [1, 1]} : vector<2x192xf32> to vector<2x64xf32>
    %23 = vector.extract_strided_slice %19 {offsets = [0, 64], sizes = [2, 64], strides = [1, 1]} : vector<2x192xf32> to vector<2x64xf32>
    %24 = vector.extract_strided_slice %19 {offsets = [0, 128], sizes = [2, 64], strides = [1, 1]} : vector<2x192xf32> to vector<2x64xf32>
    %25 = arith.mulf %23, %8 : vector<2x64xf32>
    %26 = arith.mulf %22, %21 : vector<2x64xf32>
    %27 = arith.addf %25, %26 : vector<2x64xf32>
    %28 = math.tanh %27 : vector<2x64xf32>
    %29 = arith.mulf %24, %28 : vector<2x64xf32>
    %30 = vector.extract_strided_slice %29 {offsets = [0, 0], sizes = [2, 32], strides = [1, 1]} : vector<2x64xf32> to vector<2x32xf32>
    %c0_15 = arith.constant 0 : index
    %c0_16 = arith.constant 0 : index
    %31 = vector.load %arg16[%c0_15, %c0_16] : memref<16x32xf32, #tpu.memory_space<vmem>>, vector<2x32xf32>
    tpu.vector_store %arg16[%c0_15, %c0_16], %30 {strides = array<i32>} : memref<16x32xf32, #tpu.memory_space<vmem>>, vector<2x32xf32>,
    %32 = vector.extract_strided_slice %29 {offsets = [0, 32], sizes = [2, 32], strides = [1, 1]} : vector<2x64xf32> to vector<2x32xf32>
    %c14 = arith.constant 14 : index
    %c0_17 = arith.constant 0 : index
    %33 = vector.load %arg17[%c14, %c0_17] : memref<16x32xf32, #tpu.memory_space<vmem>>, vector<2x32xf32>
    tpu.vector_store %arg17[%c14, %c0_17], %32 {strides = array<i32>} : memref<16x32xf32, #tpu.memory_space<vmem>>, vector<2x32xf32>,
    %c2 = arith.constant 2 : index
    %c0_18 = arith.constant 0 : index
    %34 = vector.load %arg15[%c2, %c0_18] : memref<16x256xf32, #tpu.memory_space<vmem>>, vector<2x256xf32>
    %35 = arith.truncf %29 : vector<2x64xf32> to vector<2x64xbf16>
    %c0_19 = arith.constant 0 : index
    %c0_20 = arith.constant 0 : index
    %36 = vector.load %arg2[%c0_19, %c0_20] : memref<64x256xbf16, #tpu.memory_space<vmem>>, vector<64x256xbf16>
    %cst_21 = arith.constant dense<0.000000e+00> : vector<2x256xf32>
    %37 = tpu.matmul %35, %36, %cst_21 {dimension_numbers = #tpu.dot_dimension_numbers<[1], [0], [0], [1], [0, 0, 1, 1], [], []>} : vector<2x64xbf16>, vector<64x256xbf16>, vector<2x256xf32> -> vector<2x256xf32>
    %38 = arith.addf %34, %37 : vector<2x256xf32>
    %39 = vector.extract_strided_slice %38 {offsets = [0, 0], sizes = [2, 192], strides = [1, 1]} : vector<2x256xf32> to vector<2x192xf32>
    %40 = arith.negf %39 : vector<2x192xf32>
    %41 = math.exp %40 : vector<2x192xf32>
    %cst_22 = arith.constant 1.000000e+00 : f32
    %42 = vector.broadcast %cst_22 : f32 to vector<2x192xf32>
    %43 = arith.addf %42, %41 : vector<2x192xf32>
    %44 = arith.divf %42, %43 : vector<2x192xf32>
    %45 = vector.extract_strided_slice %38 {offsets = [0, 192], sizes = [2, 64], strides = [1, 1]} : vector<2x256xf32> to vector<2x64xf32>
    %46 = math.tanh %45 : vector<2x64xf32>
    %47 = vector.extract_strided_slice %44 {offsets = [0, 0], sizes = [2, 64], strides = [1, 1]} : vector<2x192xf32> to vector<2x64xf32>
    %48 = vector.extract_strided_slice %44 {offsets = [0, 64], sizes = [2, 64], strides = [1, 1]} : vector<2x192xf32> to vector<2x64xf32>
    %49 = vector.extract_strided_slice %44 {offsets = [0, 128], sizes = [2, 64], strides = [1, 1]} : vector<2x192xf32> to vector<2x64xf32>
    %50 = arith.mulf %48, %27 : vector<2x64xf32>
    %51 = arith.mulf %47, %46 : vector<2x64xf32>
    %52 = arith.addf %50, %51 : vector<2x64xf32>
    %53 = math.tanh %52 : vector<2x64xf32>
    %54 = arith.mulf %49, %53 : vector<2x64xf32>
    %55 = vector.extract_strided_slice %54 {offsets = [0, 0], sizes = [2, 32], strides = [1, 1]} : vector<2x64xf32> to vector<2x32xf32>
    %c2_23 = arith.constant 2 : index
    %c0_24 = arith.constant 0 : index
    %56 = vector.load %arg16[%c2_23, %c0_24] : memref<16x32xf32, #tpu.memory_space<vmem>>, vector<2x32xf32>
    tpu.vector_store %arg16[%c2_23, %c0_24], %55 {strides = array<i32>} : memref<16x32xf32, #tpu.memory_space<vmem>>, vector<2x32xf32>,
    %57 = vector.extract_strided_slice %54 {offsets = [0, 32], sizes = [2, 32], strides = [1, 1]} : vector<2x64xf32> to vector<2x32xf32>
    %c12 = arith.constant 12 : index
    %c0_25 = arith.constant 0 : index
    %58 = vector.load %arg17[%c12, %c0_25] : memref<16x32xf32, #tpu.memory_space<vmem>>, vector<2x32xf32>
    tpu.vector_store %arg17[%c12, %c0_25], %57 {strides = array<i32>} : memref<16x32xf32, #tpu.memory_space<vmem>>, vector<2x32xf32>,
    %c4 = arith.constant 4 : index
    %c0_26 = arith.constant 0 : index
    %59 = vector.load %arg15[%c4, %c0_26] : memref<16x256xf32, #tpu.memory_space<vmem>>, vector<2x256xf32>
    %60 = arith.truncf %54 : vector<2x64xf32> to vector<2x64xbf16>
    %c0_27 = arith.constant 0 : index
    %c0_28 = arith.constant 0 : index
    %61 = vector.load %arg2[%c0_27, %c0_28] : memref<64x256xbf16, #tpu.memory_space<vmem>>, vector<64x256xbf16>
    %cst_29 = arith.constant dense<0.000000e+00> : vector<2x256xf32>
    %62 = tpu.matmul %60, %61, %cst_29 {dimension_numbers = #tpu.dot_dimension_numbers<[1], [0], [0], [1], [0, 0, 1, 1], [], []>} : vector<2x64xbf16>, vector<64x256xbf16>, vector<2x256xf32> -> vector<2x256xf32>
    %63 = arith.addf %59, %62 : vector<2x256xf32>
    %64 = vector.extract_strided_slice %63 {offsets = [0, 0], sizes = [2, 192], strides = [1, 1]} : vector<2x256xf32> to vector<2x192xf32>
    %65 = arith.negf %64 : vector<2x192xf32>
    %66 = math.exp %65 : vector<2x192xf32>
    %cst_30 = arith.constant 1.000000e+00 : f32
    %67 = vector.broadcast %cst_30 : f32 to vector<2x192xf32>
    %68 = arith.addf %67, %66 : vector<2x192xf32>
    %69 = arith.divf %67, %68 : vector<2x192xf32>
    %70 = vector.extract_strided_slice %63 {offsets = [0, 192], sizes = [2, 64], strides = [1, 1]} : vector<2x256xf32> to vector<2x64xf32>
    %71 = math.tanh %70 : vector<2x64xf32>
    %72 = vector.extract_strided_slice %69 {offsets = [0, 0], sizes = [2, 64], strides = [1, 1]} : vector<2x192xf32> to vector<2x64xf32>
    %73 = vector.extract_strided_slice %69 {offsets = [0, 64], sizes = [2, 64], strides = [1, 1]} : vector<2x192xf32> to vector<2x64xf32>
    %74 = vector.extract_strided_slice %69 {offsets = [0, 128], sizes = [2, 64], strides = [1, 1]} : vector<2x192xf32> to vector<2x64xf32>
    %75 = arith.mulf %73, %52 : vector<2x64xf32>
    %76 = arith.mulf %72, %71 : vector<2x64xf32>
    %77 = arith.addf %75, %76 : vector<2x64xf32>
    %78 = math.tanh %77 : vector<2x64xf32>
    %79 = arith.mulf %74, %78 : vector<2x64xf32>
    %80 = vector.extract_strided_slice %79 {offsets = [0, 0], sizes = [2, 32], strides = [1, 1]} : vector<2x64xf32> to vector<2x32xf32>
    %c4_31 = arith.constant 4 : index
    %c0_32 = arith.constant 0 : index
    %81 = vector.load %arg16[%c4_31, %c0_32] : memref<16x32xf32, #tpu.memory_space<vmem>>, vector<2x32xf32>
    tpu.vector_store %arg16[%c4_31, %c0_32], %80 {strides = array<i32>} : memref<16x32xf32, #tpu.memory_space<vmem>>, vector<2x32xf32>,
    %82 = vector.extract_strided_slice %79 {offsets = [0, 32], sizes = [2, 32], strides = [1, 1]} : vector<2x64xf32> to vector<2x32xf32>
    %c10 = arith.constant 10 : index
    %c0_33 = arith.constant 0 : index
    %83 = vector.load %arg17[%c10, %c0_33] : memref<16x32xf32, #tpu.memory_space<vmem>>, vector<2x32xf32>
    tpu.vector_store %arg17[%c10, %c0_33], %82 {strides = array<i32>} : memref<16x32xf32, #tpu.memory_space<vmem>>, vector<2x32xf32>,
    %c6 = arith.constant 6 : index
    %c0_34 = arith.constant 0 : index
    %84 = vector.load %arg15[%c6, %c0_34] : memref<16x256xf32, #tpu.memory_space<vmem>>, vector<2x256xf32>
    %85 = arith.truncf %79 : vector<2x64xf32> to vector<2x64xbf16>
    %c0_35 = arith.constant 0 : index
    %c0_36 = arith.constant 0 : index
    %86 = vector.load %arg2[%c0_35, %c0_36] : memref<64x256xbf16, #tpu.memory_space<vmem>>, vector<64x256xbf16>
    %cst_37 = arith.constant dense<0.000000e+00> : vector<2x256xf32>
    %87 = tpu.matmul %85, %86, %cst_37 {dimension_numbers = #tpu.dot_dimension_numbers<[1], [0], [0], [1], [0, 0, 1, 1], [], []>} : vector<2x64xbf16>, vector<64x256xbf16>, vector<2x256xf32> -> vector<2x256xf32>
    %88 = arith.addf %84, %87 : vector<2x256xf32>
    %89 = vector.extract_strided_slice %88 {offsets = [0, 0], sizes = [2, 192], strides = [1, 1]} : vector<2x256xf32> to vector<2x192xf32>
    %90 = arith.negf %89 : vector<2x192xf32>
    %91 = math.exp %90 : vector<2x192xf32>
    %cst_38 = arith.constant 1.000000e+00 : f32
    %92 = vector.broadcast %cst_38 : f32 to vector<2x192xf32>
    %93 = arith.addf %92, %91 : vector<2x192xf32>
    %94 = arith.divf %92, %93 : vector<2x192xf32>
    %95 = vector.extract_strided_slice %88 {offsets = [0, 192], sizes = [2, 64], strides = [1, 1]} : vector<2x256xf32> to vector<2x64xf32>
    %96 = math.tanh %95 : vector<2x64xf32>
    %97 = vector.extract_strided_slice %94 {offsets = [0, 0], sizes = [2, 64], strides = [1, 1]} : vector<2x192xf32> to vector<2x64xf32>
    %98 = vector.extract_strided_slice %94 {offsets = [0, 64], sizes = [2, 64], strides = [1, 1]} : vector<2x192xf32> to vector<2x64xf32>
    %99 = vector.extract_strided_slice %94 {offsets = [0, 128], sizes = [2, 64], strides = [1, 1]} : vector<2x192xf32> to vector<2x64xf32>
    %100 = arith.mulf %98, %77 : vector<2x64xf32>
    %101 = arith.mulf %97, %96 : vector<2x64xf32>
    %102 = arith.addf %100, %101 : vector<2x64xf32>
    %103 = math.tanh %102 : vector<2x64xf32>
    %104 = arith.mulf %99, %103 : vector<2x64xf32>
    %105 = vector.extract_strided_slice %104 {offsets = [0, 0], sizes = [2, 32], strides = [1, 1]} : vector<2x64xf32> to vector<2x32xf32>
    %c6_39 = arith.constant 6 : index
    %c0_40 = arith.constant 0 : index
    %106 = vector.load %arg16[%c6_39, %c0_40] : memref<16x32xf32, #tpu.memory_space<vmem>>, vector<2x32xf32>
    tpu.vector_store %arg16[%c6_39, %c0_40], %105 {strides = array<i32>} : memref<16x32xf32, #tpu.memory_space<vmem>>, vector<2x32xf32>,
    %107 = vector.extract_strided_slice %104 {offsets = [0, 32], sizes = [2, 32], strides = [1, 1]} : vector<2x64xf32> to vector<2x32xf32>
    %c8 = arith.constant 8 : index
    %c0_41 = arith.constant 0 : index
    %108 = vector.load %arg17[%c8, %c0_41] : memref<16x32xf32, #tpu.memory_space<vmem>>, vector<2x32xf32>
    tpu.vector_store %arg17[%c8, %c0_41], %107 {strides = array<i32>} : memref<16x32xf32, #tpu.memory_space<vmem>>, vector<2x32xf32>,
    %c8_42 = arith.constant 8 : index
    %c0_43 = arith.constant 0 : index
    %109 = vector.load %arg15[%c8_42, %c0_43] : memref<16x256xf32, #tpu.memory_space<vmem>>, vector<2x256xf32>
    %110 = arith.truncf %104 : vector<2x64xf32> to vector<2x64xbf16>
    %c0_44 = arith.constant 0 : index
    %c0_45 = arith.constant 0 : index
    %111 = vector.load %arg2[%c0_44, %c0_45] : memref<64x256xbf16, #tpu.memory_space<vmem>>, vector<64x256xbf16>
    %cst_46 = arith.constant dense<0.000000e+00> : vector<2x256xf32>
    %112 = tpu.matmul %110, %111, %cst_46 {dimension_numbers = #tpu.dot_dimension_numbers<[1], [0], [0], [1], [0, 0, 1, 1], [], []>} : vector<2x64xbf16>, vector<64x256xbf16>, vector<2x256xf32> -> vector<2x256xf32>
    %113 = arith.addf %109, %112 : vector<2x256xf32>
    %114 = vector.extract_strided_slice %113 {offsets = [0, 0], sizes = [2, 192], strides = [1, 1]} : vector<2x256xf32> to vector<2x192xf32>
    %115 = arith.negf %114 : vector<2x192xf32>
    %116 = math.exp %115 : vector<2x192xf32>
    %cst_47 = arith.constant 1.000000e+00 : f32
    %117 = vector.broadcast %cst_47 : f32 to vector<2x192xf32>
    %118 = arith.addf %117, %116 : vector<2x192xf32>
    %119 = arith.divf %117, %118 : vector<2x192xf32>
    %120 = vector.extract_strided_slice %113 {offsets = [0, 192], sizes = [2, 64], strides = [1, 1]} : vector<2x256xf32> to vector<2x64xf32>
    %121 = math.tanh %120 : vector<2x64xf32>
    %122 = vector.extract_strided_slice %119 {offsets = [0, 0], sizes = [2, 64], strides = [1, 1]} : vector<2x192xf32> to vector<2x64xf32>
    %123 = vector.extract_strided_slice %119 {offsets = [0, 64], sizes = [2, 64], strides = [1, 1]} : vector<2x192xf32> to vector<2x64xf32>
    %124 = vector.extract_strided_slice %119 {offsets = [0, 128], sizes = [2, 64], strides = [1, 1]} : vector<2x192xf32> to vector<2x64xf32>
    %125 = arith.mulf %123, %102 : vector<2x64xf32>
    %126 = arith.mulf %122, %121 : vector<2x64xf32>
    %127 = arith.addf %125, %126 : vector<2x64xf32>
    %128 = math.tanh %127 : vector<2x64xf32>
    %129 = arith.mulf %124, %128 : vector<2x64xf32>
    %130 = vector.extract_strided_slice %129 {offsets = [0, 0], sizes = [2, 32], strides = [1, 1]} : vector<2x64xf32> to vector<2x32xf32>
    %c8_48 = arith.constant 8 : index
    %c0_49 = arith.constant 0 : index
    %131 = vector.load %arg16[%c8_48, %c0_49] : memref<16x32xf32, #tpu.memory_space<vmem>>, vector<2x32xf32>
    tpu.vector_store %arg16[%c8_48, %c0_49], %130 {strides = array<i32>} : memref<16x32xf32, #tpu.memory_space<vmem>>, vector<2x32xf32>,
    %132 = vector.extract_strided_slice %129 {offsets = [0, 32], sizes = [2, 32], strides = [1, 1]} : vector<2x64xf32> to vector<2x32xf32>
    %c6_50 = arith.constant 6 : index
    %c0_51 = arith.constant 0 : index
    %133 = vector.load %arg17[%c6_50, %c0_51] : memref<16x32xf32, #tpu.memory_space<vmem>>, vector<2x32xf32>
    tpu.vector_store %arg17[%c6_50, %c0_51], %132 {strides = array<i32>} : memref<16x32xf32, #tpu.memory_space<vmem>>, vector<2x32xf32>,
    %c10_52 = arith.constant 10 : index
    %c0_53 = arith.constant 0 : index
    %134 = vector.load %arg15[%c10_52, %c0_53] : memref<16x256xf32, #tpu.memory_space<vmem>>, vector<2x256xf32>
    %135 = arith.truncf %129 : vector<2x64xf32> to vector<2x64xbf16>
    %c0_54 = arith.constant 0 : index
    %c0_55 = arith.constant 0 : index
    %136 = vector.load %arg2[%c0_54, %c0_55] : memref<64x256xbf16, #tpu.memory_space<vmem>>, vector<64x256xbf16>
    %cst_56 = arith.constant dense<0.000000e+00> : vector<2x256xf32>
    %137 = tpu.matmul %135, %136, %cst_56 {dimension_numbers = #tpu.dot_dimension_numbers<[1], [0], [0], [1], [0, 0, 1, 1], [], []>} : vector<2x64xbf16>, vector<64x256xbf16>, vector<2x256xf32> -> vector<2x256xf32>
    %138 = arith.addf %134, %137 : vector<2x256xf32>
    %139 = vector.extract_strided_slice %138 {offsets = [0, 0], sizes = [2, 192], strides = [1, 1]} : vector<2x256xf32> to vector<2x192xf32>
    %140 = arith.negf %139 : vector<2x192xf32>
    %141 = math.exp %140 : vector<2x192xf32>
    %cst_57 = arith.constant 1.000000e+00 : f32
    %142 = vector.broadcast %cst_57 : f32 to vector<2x192xf32>
    %143 = arith.addf %142, %141 : vector<2x192xf32>
    %144 = arith.divf %142, %143 : vector<2x192xf32>
    %145 = vector.extract_strided_slice %138 {offsets = [0, 192], sizes = [2, 64], strides = [1, 1]} : vector<2x256xf32> to vector<2x64xf32>
    %146 = math.tanh %145 : vector<2x64xf32>
    %147 = vector.extract_strided_slice %144 {offsets = [0, 0], sizes = [2, 64], strides = [1, 1]} : vector<2x192xf32> to vector<2x64xf32>
    %148 = vector.extract_strided_slice %144 {offsets = [0, 64], sizes = [2, 64], strides = [1, 1]} : vector<2x192xf32> to vector<2x64xf32>
    %149 = vector.extract_strided_slice %144 {offsets = [0, 128], sizes = [2, 64], strides = [1, 1]} : vector<2x192xf32> to vector<2x64xf32>
    %150 = arith.mulf %148, %127 : vector<2x64xf32>
    %151 = arith.mulf %147, %146 : vector<2x64xf32>
    %152 = arith.addf %150, %151 : vector<2x64xf32>
    %153 = math.tanh %152 : vector<2x64xf32>
    %154 = arith.mulf %149, %153 : vector<2x64xf32>
    %155 = vector.extract_strided_slice %154 {offsets = [0, 0], sizes = [2, 32], strides = [1, 1]} : vector<2x64xf32> to vector<2x32xf32>
    %c10_58 = arith.constant 10 : index
    %c0_59 = arith.constant 0 : index
    %156 = vector.load %arg16[%c10_58, %c0_59] : memref<16x32xf32, #tpu.memory_space<vmem>>, vector<2x32xf32>
    tpu.vector_store %arg16[%c10_58, %c0_59], %155 {strides = array<i32>} : memref<16x32xf32, #tpu.memory_space<vmem>>, vector<2x32xf32>,
    %157 = vector.extract_strided_slice %154 {offsets = [0, 32], sizes = [2, 32], strides = [1, 1]} : vector<2x64xf32> to vector<2x32xf32>
    %c4_60 = arith.constant 4 : index
    %c0_61 = arith.constant 0 : index
    %158 = vector.load %arg17[%c4_60, %c0_61] : memref<16x32xf32, #tpu.memory_space<vmem>>, vector<2x32xf32>
    tpu.vector_store %arg17[%c4_60, %c0_61], %157 {strides = array<i32>} : memref<16x32xf32, #tpu.memory_space<vmem>>, vector<2x32xf32>,
    %c12_62 = arith.constant 12 : index
    %c0_63 = arith.constant 0 : index
    %159 = vector.load %arg15[%c12_62, %c0_63] : memref<16x256xf32, #tpu.memory_space<vmem>>, vector<2x256xf32>
    %160 = arith.truncf %154 : vector<2x64xf32> to vector<2x64xbf16>
    %c0_64 = arith.constant 0 : index
    %c0_65 = arith.constant 0 : index
    %161 = vector.load %arg2[%c0_64, %c0_65] : memref<64x256xbf16, #tpu.memory_space<vmem>>, vector<64x256xbf16>
    %cst_66 = arith.constant dense<0.000000e+00> : vector<2x256xf32>
    %162 = tpu.matmul %160, %161, %cst_66 {dimension_numbers = #tpu.dot_dimension_numbers<[1], [0], [0], [1], [0, 0, 1, 1], [], []>} : vector<2x64xbf16>, vector<64x256xbf16>, vector<2x256xf32> -> vector<2x256xf32>
    %163 = arith.addf %159, %162 : vector<2x256xf32>
    %164 = vector.extract_strided_slice %163 {offsets = [0, 0], sizes = [2, 192], strides = [1, 1]} : vector<2x256xf32> to vector<2x192xf32>
    %165 = arith.negf %164 : vector<2x192xf32>
    %166 = math.exp %165 : vector<2x192xf32>
    %cst_67 = arith.constant 1.000000e+00 : f32
    %167 = vector.broadcast %cst_67 : f32 to vector<2x192xf32>
    %168 = arith.addf %167, %166 : vector<2x192xf32>
    %169 = arith.divf %167, %168 : vector<2x192xf32>
    %170 = vector.extract_strided_slice %163 {offsets = [0, 192], sizes = [2, 64], strides = [1, 1]} : vector<2x256xf32> to vector<2x64xf32>
    %171 = math.tanh %170 : vector<2x64xf32>
    %172 = vector.extract_strided_slice %169 {offsets = [0, 0], sizes = [2, 64], strides = [1, 1]} : vector<2x192xf32> to vector<2x64xf32>
    %173 = vector.extract_strided_slice %169 {offsets = [0, 64], sizes = [2, 64], strides = [1, 1]} : vector<2x192xf32> to vector<2x64xf32>
    %174 = vector.extract_strided_slice %169 {offsets = [0, 128], sizes = [2, 64], strides = [1, 1]} : vector<2x192xf32> to vector<2x64xf32>
    %175 = arith.mulf %173, %152 : vector<2x64xf32>
    %176 = arith.mulf %172, %171 : vector<2x64xf32>
    %177 = arith.addf %175, %176 : vector<2x64xf32>
    %178 = math.tanh %177 : vector<2x64xf32>
    %179 = arith.mulf %174, %178 : vector<2x64xf32>
    %180 = vector.extract_strided_slice %179 {offsets = [0, 0], sizes = [2, 32], strides = [1, 1]} : vector<2x64xf32> to vector<2x32xf32>
    %c12_68 = arith.constant 12 : index
    %c0_69 = arith.constant 0 : index
    %181 = vector.load %arg16[%c12_68, %c0_69] : memref<16x32xf32, #tpu.memory_space<vmem>>, vector<2x32xf32>
    tpu.vector_store %arg16[%c12_68, %c0_69], %180 {strides = array<i32>} : memref<16x32xf32, #tpu.memory_space<vmem>>, vector<2x32xf32>,
    %182 = vector.extract_strided_slice %179 {offsets = [0, 32], sizes = [2, 32], strides = [1, 1]} : vector<2x64xf32> to vector<2x32xf32>
    %c2_70 = arith.constant 2 : index
    %c0_71 = arith.constant 0 : index
    %183 = vector.load %arg17[%c2_70, %c0_71] : memref<16x32xf32, #tpu.memory_space<vmem>>, vector<2x32xf32>
    tpu.vector_store %arg17[%c2_70, %c0_71], %182 {strides = array<i32>} : memref<16x32xf32, #tpu.memory_space<vmem>>, vector<2x32xf32>,
    %c14_72 = arith.constant 14 : index
    %c0_73 = arith.constant 0 : index
    %184 = vector.load %arg15[%c14_72, %c0_73] : memref<16x256xf32, #tpu.memory_space<vmem>>, vector<2x256xf32>
    %185 = arith.truncf %179 : vector<2x64xf32> to vector<2x64xbf16>
    %c0_74 = arith.constant 0 : index
    %c0_75 = arith.constant 0 : index
    %186 = vector.load %arg2[%c0_74, %c0_75] : memref<64x256xbf16, #tpu.memory_space<vmem>>, vector<64x256xbf16>
    %cst_76 = arith.constant dense<0.000000e+00> : vector<2x256xf32>
    %187 = tpu.matmul %185, %186, %cst_76 {dimension_numbers = #tpu.dot_dimension_numbers<[1], [0], [0], [1], [0, 0, 1, 1], [], []>} : vector<2x64xbf16>, vector<64x256xbf16>, vector<2x256xf32> -> vector<2x256xf32>
    %188 = arith.addf %184, %187 : vector<2x256xf32>
    %189 = vector.extract_strided_slice %188 {offsets = [0, 0], sizes = [2, 192], strides = [1, 1]} : vector<2x256xf32> to vector<2x192xf32>
    %190 = arith.negf %189 : vector<2x192xf32>
    %191 = math.exp %190 : vector<2x192xf32>
    %cst_77 = arith.constant 1.000000e+00 : f32
    %192 = vector.broadcast %cst_77 : f32 to vector<2x192xf32>
    %193 = arith.addf %192, %191 : vector<2x192xf32>
    %194 = arith.divf %192, %193 : vector<2x192xf32>
    %195 = vector.extract_strided_slice %188 {offsets = [0, 192], sizes = [2, 64], strides = [1, 1]} : vector<2x256xf32> to vector<2x64xf32>
    %196 = math.tanh %195 : vector<2x64xf32>
    %197 = vector.extract_strided_slice %194 {offsets = [0, 0], sizes = [2, 64], strides = [1, 1]} : vector<2x192xf32> to vector<2x64xf32>
    %198 = vector.extract_strided_slice %194 {offsets = [0, 64], sizes = [2, 64], strides = [1, 1]} : vector<2x192xf32> to vector<2x64xf32>
    %199 = vector.extract_strided_slice %194 {offsets = [0, 128], sizes = [2, 64], strides = [1, 1]} : vector<2x192xf32> to vector<2x64xf32>
    %200 = arith.mulf %198, %177 : vector<2x64xf32>
    %201 = arith.mulf %197, %196 : vector<2x64xf32>
    %202 = arith.addf %200, %201 : vector<2x64xf32>
    %203 = math.tanh %202 : vector<2x64xf32>
    %204 = arith.mulf %199, %203 : vector<2x64xf32>
    %205 = vector.extract_strided_slice %204 {offsets = [0, 0], sizes = [2, 32], strides = [1, 1]} : vector<2x64xf32> to vector<2x32xf32>
    %c14_78 = arith.constant 14 : index
    %c0_79 = arith.constant 0 : index
    %206 = vector.load %arg16[%c14_78, %c0_79] : memref<16x32xf32, #tpu.memory_space<vmem>>, vector<2x32xf32>
    tpu.vector_store %arg16[%c14_78, %c0_79], %205 {strides = array<i32>} : memref<16x32xf32, #tpu.memory_space<vmem>>, vector<2x32xf32>,
    %207 = vector.extract_strided_slice %204 {offsets = [0, 32], sizes = [2, 32], strides = [1, 1]} : vector<2x64xf32> to vector<2x32xf32>
    %c0_80 = arith.constant 0 : index
    %c0_81 = arith.constant 0 : index
    %208 = vector.load %arg17[%c0_80, %c0_81] : memref<16x32xf32, #tpu.memory_space<vmem>>, vector<2x32xf32>
    tpu.vector_store %arg17[%c0_80, %c0_81], %207 {strides = array<i32>} : memref<16x32xf32, #tpu.memory_space<vmem>>, vector<2x32xf32>,
    %c0_82 = arith.constant 0 : index
    %c0_83 = arith.constant 0 : index
    %209 = vector.load %arg16[%c0_82, %c0_83] : memref<16x32xf32, #tpu.memory_space<vmem>>, vector<16x32xf32>
    %210 = arith.truncf %209 : vector<16x32xf32> to vector<16x32xbf16>
    %c0_84 = arith.constant 0 : index
    %c0_85 = arith.constant 0 : index
    %211 = vector.load %arg4[%c0_84, %c0_85] : memref<32x16xbf16, #tpu.memory_space<vmem>>, vector<32x16xbf16>
    %cst_86 = arith.constant dense<0.000000e+00> : vector<16x16xf32>
    %212 = tpu.matmul %210, %211, %cst_86 {dimension_numbers = #tpu.dot_dimension_numbers<[1], [0], [0], [1], [0, 0, 1, 1], [], []>} : vector<16x32xbf16>, vector<32x16xbf16>, vector<16x16xf32> -> vector<16x16xf32>
    %c0_87 = arith.constant 0 : index
    %c0_88 = arith.constant 0 : index
    %213 = vector.load %arg17[%c0_87, %c0_88] : memref<16x32xf32, #tpu.memory_space<vmem>>, vector<16x32xf32>
    %214 = arith.truncf %213 : vector<16x32xf32> to vector<16x32xbf16>
    %c0_89 = arith.constant 0 : index
    %c0_90 = arith.constant 0 : index
    %215 = vector.load %arg5[%c0_89, %c0_90] : memref<32x16xbf16, #tpu.memory_space<vmem>>, vector<32x16xbf16>
    %cst_91 = arith.constant dense<0.000000e+00> : vector<16x16xf32>
    %216 = tpu.matmul %214, %215, %cst_91 {dimension_numbers = #tpu.dot_dimension_numbers<[1], [0], [0], [1], [0, 0, 1, 1], [], []>} : vector<16x32xbf16>, vector<32x16xbf16>, vector<16x16xf32> -> vector<16x16xf32>
    %217 = arith.addf %212, %216 : vector<16x16xf32>
    %c14_92 = arith.constant 14 : index
    %c0_93 = arith.constant 0 : index
    %218 = vector.load %arg16[%c14_92, %c0_93] : memref<16x32xf32, #tpu.memory_space<vmem>>, vector<2x32xf32>
    %c14_94 = arith.constant 14 : index
    %c0_95 = arith.constant 0 : index
    %219 = vector.load %arg17[%c14_94, %c0_95] : memref<16x32xf32, #tpu.memory_space<vmem>>, vector<2x32xf32>
    %220 = arith.truncf %218 : vector<2x32xf32> to vector<2x32xbf16>
    %c0_96 = arith.constant 0 : index
    %c0_97 = arith.constant 0 : index
    %221 = vector.load %arg6[%c0_96, %c0_97] : memref<32x16xbf16, #tpu.memory_space<vmem>>, vector<32x16xbf16>
    %cst_98 = arith.constant dense<0.000000e+00> : vector<2x16xf32>
    %222 = tpu.matmul %220, %221, %cst_98 {dimension_numbers = #tpu.dot_dimension_numbers<[1], [0], [0], [1], [0, 0, 1, 1], [], []>} : vector<2x32xbf16>, vector<32x16xbf16>, vector<2x16xf32> -> vector<2x16xf32>
    %223 = arith.truncf %219 : vector<2x32xf32> to vector<2x32xbf16>
    %c0_99 = arith.constant 0 : index
    %c0_100 = arith.constant 0 : index
    %224 = vector.load %arg7[%c0_99, %c0_100] : memref<32x16xbf16, #tpu.memory_space<vmem>>, vector<32x16xbf16>
    %cst_101 = arith.constant dense<0.000000e+00> : vector<2x16xf32>
    %225 = tpu.matmul %223, %224, %cst_101 {dimension_numbers = #tpu.dot_dimension_numbers<[1], [0], [0], [1], [0, 0, 1, 1], [], []>} : vector<2x32xbf16>, vector<32x16xbf16>, vector<2x16xf32> -> vector<2x16xf32>
    %226 = arith.addf %222, %225 : vector<2x16xf32>
    %227 = vector.extract_strided_slice %217 {offsets = [0, 0], sizes = [2, 16], strides = [1, 1]} : vector<16x16xf32> to vector<2x16xf32>
    %228 = arith.addf %227, %226 : vector<2x16xf32>
    %229 = math.tanh %228 : vector<2x16xf32>
    %c0_102 = arith.constant 0 : index
    %c0_103 = arith.constant 0 : index
    %230 = vector.load %arg8[%c0_102, %c0_103] : memref<1x16xf32, #tpu.memory_space<vmem>>, vector<1x16xf32>
    %231 = vector.broadcast %230 : vector<1x16xf32> to vector<2x16xf32>
    %232 = arith.mulf %229, %231 : vector<2x16xf32>
    %cst_104 = arith.constant dense<0.000000e+00> : vector<2xf32>
    %233 = vector.multi_reduction <add>, %232, %cst_104 [1] : vector<2x16xf32> to vector<2xf32>
    %234 = vector.shape_cast %233 : vector<2xf32> to vector<2x1xf32>
    %235 = vector.extract_strided_slice %217 {offsets = [2, 0], sizes = [2, 16], strides = [1, 1]} : vector<16x16xf32> to vector<2x16xf32>
    %236 = arith.addf %235, %226 : vector<2x16xf32>
    %237 = math.tanh %236 : vector<2x16xf32>
    %c0_105 = arith.constant 0 : index
    %c0_106 = arith.constant 0 : index
    %238 = vector.load %arg8[%c0_105, %c0_106] : memref<1x16xf32, #tpu.memory_space<vmem>>, vector<1x16xf32>
    %239 = vector.broadcast %238 : vector<1x16xf32> to vector<2x16xf32>
    %240 = arith.mulf %237, %239 : vector<2x16xf32>
    %cst_107 = arith.constant dense<0.000000e+00> : vector<2xf32>
    %241 = vector.multi_reduction <add>, %240, %cst_107 [1] : vector<2x16xf32> to vector<2xf32>
    %242 = vector.shape_cast %241 : vector<2xf32> to vector<2x1xf32>
    %243 = vector.extract_strided_slice %217 {offsets = [4, 0], sizes = [2, 16], strides = [1, 1]} : vector<16x16xf32> to vector<2x16xf32>
    %244 = arith.addf %243, %226 : vector<2x16xf32>
    %245 = math.tanh %244 : vector<2x16xf32>
    %c0_108 = arith.constant 0 : index
    %c0_109 = arith.constant 0 : index
    %246 = vector.load %arg8[%c0_108, %c0_109] : memref<1x16xf32, #tpu.memory_space<vmem>>, vector<1x16xf32>
    %247 = vector.broadcast %246 : vector<1x16xf32> to vector<2x16xf32>
    %248 = arith.mulf %245, %247 : vector<2x16xf32>
    %cst_110 = arith.constant dense<0.000000e+00> : vector<2xf32>
    %249 = vector.multi_reduction <add>, %248, %cst_110 [1] : vector<2x16xf32> to vector<2xf32>
    %250 = vector.shape_cast %249 : vector<2xf32> to vector<2x1xf32>
    %251 = vector.extract_strided_slice %217 {offsets = [6, 0], sizes = [2, 16], strides = [1, 1]} : vector<16x16xf32> to vector<2x16xf32>
    %252 = arith.addf %251, %226 : vector<2x16xf32>
    %253 = math.tanh %252 : vector<2x16xf32>
    %c0_111 = arith.constant 0 : index
    %c0_112 = arith.constant 0 : index
    %254 = vector.load %arg8[%c0_111, %c0_112] : memref<1x16xf32, #tpu.memory_space<vmem>>, vector<1x16xf32>
    %255 = vector.broadcast %254 : vector<1x16xf32> to vector<2x16xf32>
    %256 = arith.mulf %253, %255 : vector<2x16xf32>
    %cst_113 = arith.constant dense<0.000000e+00> : vector<2xf32>
    %257 = vector.multi_reduction <add>, %256, %cst_113 [1] : vector<2x16xf32> to vector<2xf32>
    %258 = vector.shape_cast %257 : vector<2xf32> to vector<2x1xf32>
    %259 = vector.extract_strided_slice %217 {offsets = [8, 0], sizes = [2, 16], strides = [1, 1]} : vector<16x16xf32> to vector<2x16xf32>
    %260 = arith.addf %259, %226 : vector<2x16xf32>
    %261 = math.tanh %260 : vector<2x16xf32>
    %c0_114 = arith.constant 0 : index
    %c0_115 = arith.constant 0 : index
    %262 = vector.load %arg8[%c0_114, %c0_115] : memref<1x16xf32, #tpu.memory_space<vmem>>, vector<1x16xf32>
    %263 = vector.broadcast %262 : vector<1x16xf32> to vector<2x16xf32>
    %264 = arith.mulf %261, %263 : vector<2x16xf32>
    %cst_116 = arith.constant dense<0.000000e+00> : vector<2xf32>
    %265 = vector.multi_reduction <add>, %264, %cst_116 [1] : vector<2x16xf32> to vector<2xf32>
    %266 = vector.shape_cast %265 : vector<2xf32> to vector<2x1xf32>
    %267 = vector.extract_strided_slice %217 {offsets = [10, 0], sizes = [2, 16], strides = [1, 1]} : vector<16x16xf32> to vector<2x16xf32>
    %268 = arith.addf %267, %226 : vector<2x16xf32>
    %269 = math.tanh %268 : vector<2x16xf32>
    %c0_117 = arith.constant 0 : index
    %c0_118 = arith.constant 0 : index
    %270 = vector.load %arg8[%c0_117, %c0_118] : memref<1x16xf32, #tpu.memory_space<vmem>>, vector<1x16xf32>
    %271 = vector.broadcast %270 : vector<1x16xf32> to vector<2x16xf32>
    %272 = arith.mulf %269, %271 : vector<2x16xf32>
    %cst_119 = arith.constant dense<0.000000e+00> : vector<2xf32>
    %273 = vector.multi_reduction <add>, %272, %cst_119 [1] : vector<2x16xf32> to vector<2xf32>
    %274 = vector.shape_cast %273 : vector<2xf32> to vector<2x1xf32>
    %275 = vector.extract_strided_slice %217 {offsets = [12, 0], sizes = [2, 16], strides = [1, 1]} : vector<16x16xf32> to vector<2x16xf32>
    %276 = arith.addf %275, %226 : vector<2x16xf32>
    %277 = math.tanh %276 : vector<2x16xf32>
    %c0_120 = arith.constant 0 : index
    %c0_121 = arith.constant 0 : index
    %278 = vector.load %arg8[%c0_120, %c0_121] : memref<1x16xf32, #tpu.memory_space<vmem>>, vector<1x16xf32>
    %279 = vector.broadcast %278 : vector<1x16xf32> to vector<2x16xf32>
    %280 = arith.mulf %277, %279 : vector<2x16xf32>
    %cst_122 = arith.constant dense<0.000000e+00> : vector<2xf32>
    %281 = vector.multi_reduction <add>, %280, %cst_122 [1] : vector<2x16xf32> to vector<2xf32>
    %282 = vector.shape_cast %281 : vector<2xf32> to vector<2x1xf32>
    %283 = vector.extract_strided_slice %217 {offsets = [14, 0], sizes = [2, 16], strides = [1, 1]} : vector<16x16xf32> to vector<2x16xf32>
    %284 = arith.addf %283, %226 : vector<2x16xf32>
    %285 = math.tanh %284 : vector<2x16xf32>
    %c0_123 = arith.constant 0 : index
    %c0_124 = arith.constant 0 : index
    %286 = vector.load %arg8[%c0_123, %c0_124] : memref<1x16xf32, #tpu.memory_space<vmem>>, vector<1x16xf32>
    %287 = vector.broadcast %286 : vector<1x16xf32> to vector<2x16xf32>
    %288 = arith.mulf %285, %287 : vector<2x16xf32>
    %cst_125 = arith.constant dense<0.000000e+00> : vector<2xf32>
    %289 = vector.multi_reduction <add>, %288, %cst_125 [1] : vector<2x16xf32> to vector<2xf32>
    %290 = vector.shape_cast %289 : vector<2xf32> to vector<2x1xf32>
    %291 = arith.maximumf %234, %242 : vector<2x1xf32>
    %292 = arith.maximumf %291, %250 : vector<2x1xf32>
    %293 = arith.maximumf %292, %258 : vector<2x1xf32>
    %294 = arith.maximumf %293, %266 : vector<2x1xf32>
    %295 = arith.maximumf %294, %274 : vector<2x1xf32>
    %296 = arith.maximumf %295, %282 : vector<2x1xf32>
    %297 = arith.maximumf %296, %290 : vector<2x1xf32>
    %cst_126 = arith.constant 0.000000e+00 : f32
    %298 = vector.broadcast %cst_126 : f32 to vector<2x1xf32>
    %cst_127 = arith.constant 0.000000e+00 : f32
    %299 = vector.broadcast %cst_127 : f32 to vector<2x32xf32>
    %cst_128 = arith.constant 0.000000e+00 : f32
    %300 = vector.broadcast %cst_128 : f32 to vector<2x32xf32>
    %301 = arith.subf %234, %297 : vector<2x1xf32>
    %302 = math.exp %301 : vector<2x1xf32>
    %303 = arith.addf %298, %302 : vector<2x1xf32>
    %c0_129 = arith.constant 0 : index
    %c0_130 = arith.constant 0 : index
    %304 = vector.load %arg16[%c0_129, %c0_130] : memref<16x32xf32, #tpu.memory_space<vmem>>, vector<2x32xf32>
    %305 = vector.broadcast %302 : vector<2x1xf32> to vector<2x32xf32>
    %306 = arith.mulf %305, %304 : vector<2x32xf32>
    %307 = arith.addf %299, %306 : vector<2x32xf32>
    %c0_131 = arith.constant 0 : index
    %c0_132 = arith.constant 0 : index
    %308 = vector.load %arg17[%c0_131, %c0_132] : memref<16x32xf32, #tpu.memory_space<vmem>>, vector<2x32xf32>
    %309 = vector.broadcast %302 : vector<2x1xf32> to vector<2x32xf32>
    %310 = arith.mulf %309, %308 : vector<2x32xf32>
    %311 = arith.addf %300, %310 : vector<2x32xf32>
    %312 = arith.subf %242, %297 : vector<2x1xf32>
    %313 = math.exp %312 : vector<2x1xf32>
    %314 = arith.addf %303, %313 : vector<2x1xf32>
    %c2_133 = arith.constant 2 : index
    %c0_134 = arith.constant 0 : index
    %315 = vector.load %arg16[%c2_133, %c0_134] : memref<16x32xf32, #tpu.memory_space<vmem>>, vector<2x32xf32>
    %316 = vector.broadcast %313 : vector<2x1xf32> to vector<2x32xf32>
    %317 = arith.mulf %316, %315 : vector<2x32xf32>
    %318 = arith.addf %307, %317 : vector<2x32xf32>
    %c2_135 = arith.constant 2 : index
    %c0_136 = arith.constant 0 : index
    %319 = vector.load %arg17[%c2_135, %c0_136] : memref<16x32xf32, #tpu.memory_space<vmem>>, vector<2x32xf32>
    %320 = vector.broadcast %313 : vector<2x1xf32> to vector<2x32xf32>
    %321 = arith.mulf %320, %319 : vector<2x32xf32>
    %322 = arith.addf %311, %321 : vector<2x32xf32>
    %323 = arith.subf %250, %297 : vector<2x1xf32>
    %324 = math.exp %323 : vector<2x1xf32>
    %325 = arith.addf %314, %324 : vector<2x1xf32>
    %c4_137 = arith.constant 4 : index
    %c0_138 = arith.constant 0 : index
    %326 = vector.load %arg16[%c4_137, %c0_138] : memref<16x32xf32, #tpu.memory_space<vmem>>, vector<2x32xf32>
    %327 = vector.broadcast %324 : vector<2x1xf32> to vector<2x32xf32>
    %328 = arith.mulf %327, %326 : vector<2x32xf32>
    %329 = arith.addf %318, %328 : vector<2x32xf32>
    %c4_139 = arith.constant 4 : index
    %c0_140 = arith.constant 0 : index
    %330 = vector.load %arg17[%c4_139, %c0_140] : memref<16x32xf32, #tpu.memory_space<vmem>>, vector<2x32xf32>
    %331 = vector.broadcast %324 : vector<2x1xf32> to vector<2x32xf32>
    %332 = arith.mulf %331, %330 : vector<2x32xf32>
    %333 = arith.addf %322, %332 : vector<2x32xf32>
    %334 = arith.subf %258, %297 : vector<2x1xf32>
    %335 = math.exp %334 : vector<2x1xf32>
    %336 = arith.addf %325, %335 : vector<2x1xf32>
    %c6_141 = arith.constant 6 : index
    %c0_142 = arith.constant 0 : index
    %337 = vector.load %arg16[%c6_141, %c0_142] : memref<16x32xf32, #tpu.memory_space<vmem>>, vector<2x32xf32>
    %338 = vector.broadcast %335 : vector<2x1xf32> to vector<2x32xf32>
    %339 = arith.mulf %338, %337 : vector<2x32xf32>
    %340 = arith.addf %329, %339 : vector<2x32xf32>
    %c6_143 = arith.constant 6 : index
    %c0_144 = arith.constant 0 : index
    %341 = vector.load %arg17[%c6_143, %c0_144] : memref<16x32xf32, #tpu.memory_space<vmem>>, vector<2x32xf32>
    %342 = vector.broadcast %335 : vector<2x1xf32> to vector<2x32xf32>
    %343 = arith.mulf %342, %341 : vector<2x32xf32>
    %344 = arith.addf %333, %343 : vector<2x32xf32>
    %345 = arith.subf %266, %297 : vector<2x1xf32>
    %346 = math.exp %345 : vector<2x1xf32>
    %347 = arith.addf %336, %346 : vector<2x1xf32>
    %c8_145 = arith.constant 8 : index
    %c0_146 = arith.constant 0 : index
    %348 = vector.load %arg16[%c8_145, %c0_146] : memref<16x32xf32, #tpu.memory_space<vmem>>, vector<2x32xf32>
    %349 = vector.broadcast %346 : vector<2x1xf32> to vector<2x32xf32>
    %350 = arith.mulf %349, %348 : vector<2x32xf32>
    %351 = arith.addf %340, %350 : vector<2x32xf32>
    %c8_147 = arith.constant 8 : index
    %c0_148 = arith.constant 0 : index
    %352 = vector.load %arg17[%c8_147, %c0_148] : memref<16x32xf32, #tpu.memory_space<vmem>>, vector<2x32xf32>
    %353 = vector.broadcast %346 : vector<2x1xf32> to vector<2x32xf32>
    %354 = arith.mulf %353, %352 : vector<2x32xf32>
    %355 = arith.addf %344, %354 : vector<2x32xf32>
    %356 = arith.subf %274, %297 : vector<2x1xf32>
    %357 = math.exp %356 : vector<2x1xf32>
    %358 = arith.addf %347, %357 : vector<2x1xf32>
    %c10_149 = arith.constant 10 : index
    %c0_150 = arith.constant 0 : index
    %359 = vector.load %arg16[%c10_149, %c0_150] : memref<16x32xf32, #tpu.memory_space<vmem>>, vector<2x32xf32>
    %360 = vector.broadcast %357 : vector<2x1xf32> to vector<2x32xf32>
    %361 = arith.mulf %360, %359 : vector<2x32xf32>
    %362 = arith.addf %351, %361 : vector<2x32xf32>
    %c10_151 = arith.constant 10 : index
    %c0_152 = arith.constant 0 : index
    %363 = vector.load %arg17[%c10_151, %c0_152] : memref<16x32xf32, #tpu.memory_space<vmem>>, vector<2x32xf32>
    %364 = vector.broadcast %357 : vector<2x1xf32> to vector<2x32xf32>
    %365 = arith.mulf %364, %363 : vector<2x32xf32>
    %366 = arith.addf %355, %365 : vector<2x32xf32>
    %367 = arith.subf %282, %297 : vector<2x1xf32>
    %368 = math.exp %367 : vector<2x1xf32>
    %369 = arith.addf %358, %368 : vector<2x1xf32>
    %c12_153 = arith.constant 12 : index
    %c0_154 = arith.constant 0 : index
    %370 = vector.load %arg16[%c12_153, %c0_154] : memref<16x32xf32, #tpu.memory_space<vmem>>, vector<2x32xf32>
    %371 = vector.broadcast %368 : vector<2x1xf32> to vector<2x32xf32>
    %372 = arith.mulf %371, %370 : vector<2x32xf32>
    %373 = arith.addf %362, %372 : vector<2x32xf32>
    %c12_155 = arith.constant 12 : index
    %c0_156 = arith.constant 0 : index
    %374 = vector.load %arg17[%c12_155, %c0_156] : memref<16x32xf32, #tpu.memory_space<vmem>>, vector<2x32xf32>
    %375 = vector.broadcast %368 : vector<2x1xf32> to vector<2x32xf32>
    %376 = arith.mulf %375, %374 : vector<2x32xf32>
    %377 = arith.addf %366, %376 : vector<2x32xf32>
    %378 = arith.subf %290, %297 : vector<2x1xf32>
    %379 = math.exp %378 : vector<2x1xf32>
    %380 = arith.addf %369, %379 : vector<2x1xf32>
    %c14_157 = arith.constant 14 : index
    %c0_158 = arith.constant 0 : index
    %381 = vector.load %arg16[%c14_157, %c0_158] : memref<16x32xf32, #tpu.memory_space<vmem>>, vector<2x32xf32>
    %382 = vector.broadcast %379 : vector<2x1xf32> to vector<2x32xf32>
    %383 = arith.mulf %382, %381 : vector<2x32xf32>
    %384 = arith.addf %373, %383 : vector<2x32xf32>
    %c14_159 = arith.constant 14 : index
    %c0_160 = arith.constant 0 : index
    %385 = vector.load %arg17[%c14_159, %c0_160] : memref<16x32xf32, #tpu.memory_space<vmem>>, vector<2x32xf32>
    %386 = vector.broadcast %379 : vector<2x1xf32> to vector<2x32xf32>
    %387 = arith.mulf %386, %385 : vector<2x32xf32>
    %388 = arith.addf %377, %387 : vector<2x32xf32>
    %cst_161 = arith.constant 1.000000e+00 : f32
    %389 = vector.broadcast %cst_161 : f32 to vector<2x1xf32>
    %390 = arith.divf %389, %380 : vector<2x1xf32>
    %391 = vector.broadcast %390 : vector<2x1xf32> to vector<2x32xf32>
    %392 = arith.mulf %384, %391 : vector<2x32xf32>
    %393 = vector.broadcast %390 : vector<2x1xf32> to vector<2x32xf32>
    %394 = arith.mulf %388, %393 : vector<2x32xf32>
    %395 = arith.truncf %392 : vector<2x32xf32> to vector<2x32xbf16>
    %c0_162 = arith.constant 0 : index
    %c0_163 = arith.constant 0 : index
    %396 = vector.load %arg9[%c0_162, %c0_163] : memref<32x64xbf16, #tpu.memory_space<vmem>>, vector<32x64xbf16>
    %cst_164 = arith.constant dense<0.000000e+00> : vector<2x64xf32>
    %397 = tpu.matmul %395, %396, %cst_164 {dimension_numbers = #tpu.dot_dimension_numbers<[1], [0], [0], [1], [0, 0, 1, 1], [], []>} : vector<2x32xbf16>, vector<32x64xbf16>, vector<2x64xf32> -> vector<2x64xf32>
    %398 = arith.truncf %394 : vector<2x32xf32> to vector<2x32xbf16>
    %c0_165 = arith.constant 0 : index
    %c0_166 = arith.constant 0 : index
    %399 = vector.load %arg10[%c0_165, %c0_166] : memref<32x64xbf16, #tpu.memory_space<vmem>>, vector<32x64xbf16>
    %cst_167 = arith.constant dense<0.000000e+00> : vector<2x64xf32>
    %400 = tpu.matmul %398, %399, %cst_167 {dimension_numbers = #tpu.dot_dimension_numbers<[1], [0], [0], [1], [0, 0, 1, 1], [], []>} : vector<2x32xbf16>, vector<32x64xbf16>, vector<2x64xf32> -> vector<2x64xf32>
    %401 = arith.addf %397, %400 : vector<2x64xf32>
    %c0_168 = arith.constant 0 : index
    %c0_169 = arith.constant 0 : index
    %402 = vector.load %arg11[%c0_168, %c0_169] : memref<1x64xf32, #tpu.memory_space<vmem>>, vector<1x64xf32>
    %403 = vector.broadcast %402 : vector<1x64xf32> to vector<2x64xf32>
    %404 = arith.addf %401, %403 : vector<2x64xf32>
    %405 = math.tanh %404 : vector<2x64xf32>
    %406 = arith.truncf %405 : vector<2x64xf32> to vector<2x64xbf16>
    %c0_170 = arith.constant 0 : index
    %c0_171 = arith.constant 0 : index
    %407 = vector.load %arg12[%c0_170, %c0_171] : memref<64x4xbf16, #tpu.memory_space<vmem>>, vector<64x4xbf16>
    %cst_172 = arith.constant dense<0.000000e+00> : vector<2x4xf32>
    %408 = tpu.matmul %406, %407, %cst_172 {dimension_numbers = #tpu.dot_dimension_numbers<[1], [0], [0], [1], [0, 0, 1, 1], [], []>} : vector<2x64xbf16>, vector<64x4xbf16>, vector<2x4xf32> -> vector<2x4xf32>
    %c0_173 = arith.constant 0 : index
    %c0_174 = arith.constant 0 : index
    %409 = vector.load %arg13[%c0_173, %c0_174] : memref<1x4xf32, #tpu.memory_space<vmem>>, vector<1x4xf32>
    %410 = vector.broadcast %409 : vector<1x4xf32> to vector<2x4xf32>
    %411 = arith.addf %408, %410 : vector<2x4xf32>
    %cst_175 = arith.constant dense<0xFF800000> : vector<2xf32>
    %412 = vector.multi_reduction <maximumf>, %411, %cst_175 [1] : vector<2x4xf32> to vector<2xf32>
    %cst_176 = arith.constant 0xFF800000 : f32
    %413 = vector.broadcast %cst_176 : f32 to vector<2xf32>
    %414 = arith.maximumf %413, %412 : vector<2xf32>
    %415 = vector.shape_cast %414 : vector<2xf32> to vector<2x1xf32>
    %416 = vector.broadcast %415 : vector<2x1xf32> to vector<2x4xf32>
    %417 = arith.subf %411, %416 : vector<2x4xf32>
    %418 = math.exp %417 : vector<2x4xf32>
    %cst_177 = arith.constant dense<0.000000e+00> : vector<2xf32>
    %419 = vector.multi_reduction <add>, %418, %cst_177 [1] : vector<2x4xf32> to vector<2xf32>
    %420 = vector.shape_cast %419 : vector<2xf32> to vector<2x1xf32>
    %421 = vector.broadcast %420 : vector<2x1xf32> to vector<2x4xf32>
    %422 = arith.divf %418, %421 : vector<2x4xf32>
    %c0_178 = arith.constant 0 : index
    %c0_179 = arith.constant 0 : index
    %423 = vector.load %arg14[%c0_178, %c0_179] : memref<2x4xf32, #tpu.memory_space<vmem>>, vector<2x4xf32>
    tpu.vector_store %arg14[%c0_178, %c0_179], %422 {strides = array<i32>} : memref<2x4xf32, #tpu.memory_space<vmem>>, vector<2x4xf32>,
    return
  }
}

</mosaic_0001>

<llo_original>
// kernel: bilstm_baseline_forward.1
$region0: #{bilstm_baseline_forward.1}
  #allocation0 [shape = 'u32[]', space=smem, size = 0x4, offset = 0x4, fixed_abs, tag = 'smem constant byte address 0x4 - core index']
  #allocation1 [shape = 'u32[144,128]{1,0:T(1,128)}', space=vmem, size = 0x12000, scoped, tag = 'internal scratch']
  #allocation2 [shape = 'f32[16,256]{1,0:T(8,128)}', space=vmem, size = 0x4000, scoped, tag = 'scratch operand']
  #allocation3 [shape = 'f32[16,32]{1,0:T(8,128)}', space=vmem, size = 0x2000, scoped, tag = 'scratch operand']
  #allocation4 [shape = 'f32[16,32]{1,0:T(8,128)}', space=vmem, size = 0x2000, scoped, tag = 'scratch operand']
  %s0 = inlined_call_operand.vmem [shape: bf16[16,32], index: 0, kind: input, shape index: {}]
  %s1 = inlined_call_operand.vmem [shape: bf16[32,256], index: 1, kind: input, shape index: {}]
  %s2 = inlined_call_operand.vmem [shape: bf16[64,256], index: 2, kind: input, shape index: {}]
  %s3 = inlined_call_operand.vmem [shape: f32[1,256], index: 3, kind: input, shape index: {}]
  %s4 = inlined_call_operand.vmem [shape: bf16[32,16], index: 4, kind: input, shape index: {}]
  %s5 = inlined_call_operand.vmem [shape: bf16[32,16], index: 5, kind: input, shape index: {}]
  %s6 = inlined_call_operand.vmem [shape: bf16[32,16], index: 6, kind: input, shape index: {}]
  %s7 = inlined_call_operand.vmem [shape: bf16[32,16], index: 7, kind: input, shape index: {}]
  %s8 = inlined_call_operand.vmem [shape: f32[1,16], index: 8, kind: input, shape index: {}]
  %s9 = inlined_call_operand.vmem [shape: bf16[32,64], index: 9, kind: input, shape index: {}]
  %s10 = inlined_call_operand.vmem [shape: bf16[32,64], index: 10, kind: input, shape index: {}]
  %s11 = inlined_call_operand.vmem [shape: f32[1,64], index: 11, kind: input, shape index: {}]
  %s12 = inlined_call_operand.vmem [shape: bf16[64,4], index: 12, kind: input, shape index: {}]
  %s13 = inlined_call_operand.vmem [shape: f32[1,4], index: 13, kind: input, shape index: {}]
  %s14 = inlined_call_operand.hbm [shape: f32[2,4], index: 14, kind: output, shape index: {}]
  %s15 = sld [smem:[#allocation0]]
  $region66: #{bilstm_baseline_forward.1} parent=0
    _
  %s17 = ssub.s32 1, %s15
  %s18 = scalar_select 0, %s17, %s15
  $region1: #{bilstm_baseline_forward.1} parent=0
    #allocation5 [shape = 'u8[1024]{0}', space=vmem, size = 0x400, scoped, tag = 'output window, operand 0, single buffered']
    #allocation6 [shape = 's32[1]{0}', space=sflag, size = 0x4, scoped, tag = 'scoped memory for bilstm_baseline_forward.1']
    %19 = vsyncpa [#allocation6], 0
    // Predicated region
    $region2: #{bilstm_baseline_forward.1} parent=1 // pred_check
      _
    $region3: #{bilstm_baseline_forward.1} parent=1 // pred_check_branch
      %21 = sbr.rel (0) target = $region5
    $region4: #{bilstm_baseline_forward.1} parent=1 // pred_region
      _
    $region5: #{bilstm_baseline_forward.1} parent=1 // pred_fallthru
      _
    // Predicated region
    $region6: #{bilstm_baseline_forward.1} parent=1 // pred_check
      _
    $region7: #{bilstm_baseline_forward.1} parent=1 // pred_check_branch
      %23 = sbr.rel (0) target = $region9
    $region8: #{bilstm_baseline_forward.1} parent=1 // pred_region
      _
    $region9: #{bilstm_baseline_forward.1} parent=1 // pred_fallthru
      _
    // Predicated region
    $region10: #{bilstm_baseline_forward.1} parent=1 // pred_check
      _
    $region11: #{bilstm_baseline_forward.1} parent=1 // pred_check_branch
      %25 = sbr.rel (0) target = $region13
    $region12: #{bilstm_baseline_forward.1} parent=1 // pred_region
      _
    $region13: #{bilstm_baseline_forward.1} parent=1 // pred_fallthru
      _
    // Predicated region
    $region14: #{bilstm_baseline_forward.1} parent=1 // pred_check
      _
    $region15: #{bilstm_baseline_forward.1} parent=1 // pred_check_branch
      %27 = sbr.rel (0) target = $region17
    $region16: #{bilstm_baseline_forward.1} parent=1 // pred_region
      _
    $region17: #{bilstm_baseline_forward.1} parent=1 // pred_fallthru
      _
    // Predicated region
    $region18: #{bilstm_baseline_forward.1} parent=1 // pred_check
      _
    $region19: #{bilstm_baseline_forward.1} parent=1 // pred_check_branch
      %29 = sbr.rel (0) target = $region21
    $region20: #{bilstm_baseline_forward.1} parent=1 // pred_region
      _
    $region21: #{bilstm_baseline_forward.1} parent=1 // pred_fallthru
      _
    // Predicated region
    $region22: #{bilstm_baseline_forward.1} parent=1 // pred_check
      _
    $region23: #{bilstm_baseline_forward.1} parent=1 // pred_check_branch
      %31 = sbr.rel (0) target = $region25
    $region24: #{bilstm_baseline_forward.1} parent=1 // pred_region
      _
    $region25: #{bilstm_baseline_forward.1} parent=1 // pred_fallthru
      _
    // Predicated region
    $region26: #{bilstm_baseline_forward.1} parent=1 // pred_check
      _
    $region27: #{bilstm_baseline_forward.1} parent=1 // pred_check_branch
      %33 = sbr.rel (0) target = $region29
    $region28: #{bilstm_baseline_forward.1} parent=1 // pred_region
      _
    $region29: #{bilstm_baseline_forward.1} parent=1 // pred_fallthru
      _
    // Predicated region
    $region30: #{bilstm_baseline_forward.1} parent=1 // pred_check
      _
    $region31: #{bilstm_baseline_forward.1} parent=1 // pred_check_branch
      %35 = sbr.rel (0) target = $region33
    $region32: #{bilstm_baseline_forward.1} parent=1 // pred_region
      _
    $region33: #{bilstm_baseline_forward.1} parent=1 // pred_fallthru
      _
    // Predicated region
    $region34: #{bilstm_baseline_forward.1} parent=1 // pred_check
      _
    $region35: #{bilstm_baseline_forward.1} parent=1 // pred_check_branch
      %37 = sbr.rel (0) target = $region37
    $region36: #{bilstm_baseline_forward.1} parent=1 // pred_region
      _
    $region37: #{bilstm_baseline_forward.1} parent=1 // pred_fallthru
      _
    // Predicated region
    $region38: #{bilstm_baseline_forward.1} parent=1 // pred_check
      _
    $region39: #{bilstm_baseline_forward.1} parent=1 // pred_check_branch
      %39 = sbr.rel (0) target = $region41
    $region40: #{bilstm_baseline_forward.1} parent=1 // pred_region
      _
    $region41: #{bilstm_baseline_forward.1} parent=1 // pred_fallthru
      _
    // Predicated region
    $region42: #{bilstm_baseline_forward.1} parent=1 // pred_check
      _
    $region43: #{bilstm_baseline_forward.1} parent=1 // pred_check_branch
      %41 = sbr.rel (0) target = $region45
    $region44: #{bilstm_baseline_forward.1} parent=1 // pred_region
      _
    $region45: #{bilstm_baseline_forward.1} parent=1 // pred_fallthru
      _
    // Predicated region
    $region46: #{bilstm_baseline_forward.1} parent=1 // pred_check
      _
    $region47: #{bilstm_baseline_forward.1} parent=1 // pred_check_branch
      %43 = sbr.rel (0) target = $region49
    $region48: #{bilstm_baseline_forward.1} parent=1 // pred_region
      _
    $region49: #{bilstm_baseline_forward.1} parent=1 // pred_fallthru
      _
    // Predicated region
    $region50: #{bilstm_baseline_forward.1} parent=1 // pred_check
      _
    $region51: #{bilstm_baseline_forward.1} parent=1 // pred_check_branch
      %45 = sbr.rel (0) target = $region53
    $region52: #{bilstm_baseline_forward.1} parent=1 // pred_region
      _
    $region53: #{bilstm_baseline_forward.1} parent=1 // pred_fallthru
      _
    // Predicated region
    $region54: #{bilstm_baseline_forward.1} parent=1 // pred_check
      _
    $region55: #{bilstm_baseline_forward.1} parent=1 // pred_check_branch
      %47 = sbr.rel (0) target = $region57
    $region56: #{bilstm_baseline_forward.1} parent=1 // pred_region
      _
    $region57: #{bilstm_baseline_forward.1} parent=1 // pred_fallthru
      _
    %v49 = vld [vmem:[%s0] sm:$0xf]
    %v50 = vld [vmem:[%s0 + $0x4] sm:$0xf]
    %v51 = vld [vmem:[%s1] sm:$0xff]
    %v52 = vld [vmem:[%s1 + $0x8] sm:$0xff]
    %v53 = vld [vmem:[%s1 + $0x10] sm:$0xff]
    %v54 = vld [vmem:[%s1 + $0x18] sm:$0xff]
    %v55 = vld [vmem:[%s3] sm:$0x3]
    %v57 = vlaneseq
    %v58 = vshrl.u32 %v57, 7
    %v59 = vsub.s32 0, %v58
    %v60 = vrot.slane %v55, %v59
    %v61 = vlaneseq
    %v62 = vshrl.u32 %v61, 7
    %v63 = vsub.s32 1, %v62
    %v64 = vrot.slane %v55, %v63
    %v69 = vunpack.c.l.b16 %v49
    %v70 = vunpack.c.l.b16 %v50
    %v71 = vpack.c.b16 %v70, %v69
    %v76 = vunpack.c.l.b16 %v51
    %v77 = vunpack.c.h.b16 %v51
    %v78 = vunpack.c.l.b16 %v52
    %v79 = vunpack.c.h.b16 %v52
    %v80 = vunpack.c.l.b16 %v53
    %v81 = vunpack.c.h.b16 %v53
    %v82 = vunpack.c.l.b16 %v54
    %v83 = vunpack.c.h.b16 %v54
    %v84 = vpack.c.b16 %v78, %v76
    %v85 = vpack.c.b16 %v79, %v77
    %v86 = vpack.c.b16 %v82, %v80
    %v87 = vpack.c.b16 %v83, %v81
    %vm92 = vcmask 261120
    %v94 = vsel %vm92, %v71, 0
    %96 = vmatprep.subr.bf16.mxu0 0
    %97 = vmatpush1.bf16.msra.mxu0 0
    %98 = vmatprep.subr.bf16.mxu0 0
    %99 = vmatpush1.bf16.msra.mxu0 0
    %100 = vmatprep.subr.bf16.mxu0 0
    %101 = vmatpush1.bf16.msra.mxu0 0
    %102 = vmatprep.subr.bf16.mxu0 0
    %103 = vmatpush1.bf16.msra.mxu0 0
    %104 = vmatprep.subr.bf16.mxu0 0
    %105 = vmatpush1.bf16.msra.mxu0 0
    %106 = vmatprep.subr.bf16.mxu0 0
    %107 = vmatpush1.bf16.msra.mxu0 0
    %108 = vmatprep.subr.bf16.mxu0 %v87
    %109 = vmatpush1.bf16.msra.mxu0 %v86
    %110 = vmatprep.subr.bf16.mxu0 %v85
    %111 = vmatpush1.bf16.msra.mxu0 %v84
    %112 = vmatprep.subr.bf16.mxu0 0
    %113 = vmatpush2.bf16.msra.mxu0 0
    %114 = vmatprep.subr.bf16.mxu0 0
    %115 = vmatpush2.bf16.msra.mxu0 0
    %116 = vmatprep.subr.bf16.mxu0 0
    %117 = vmatpush2.bf16.msra.mxu0 0
    %118 = vmatprep.subr.bf16.mxu0 0
    %119 = vmatpush2.bf16.msra.mxu0 0
    %120 = vmatprep.subr.bf16.mxu0 0
    %121 = vmatpush2.bf16.msra.mxu0 0
    %122 = vmatprep.subr.bf16.mxu0 0
    %123 = vmatpush2.bf16.msra.mxu0 0
    %124 = vmatprep.subr.bf16.mxu0 0
    %125 = vmatpush2.bf16.msra.mxu0 0
    %126 = vmatprep.subr.bf16.mxu0 0
    %127 = vmatpush2.bf16.msra.mxu0 0
    %128 = vmatprep.mubr.bf16.mxu0 0
    %129 = vmatmul.mubr.bf16.gmra.mxu0 %v94
    %v130 = vpop.f32.mrf.mxu0
    %v131 = vadd.f32 %v60, %v130
    %v132 = vpop.f32.mrf.mxu0
    %v133 = vadd.f32 %v64, %v132
    %v134 = vpop.f32.mrf.mxu0
    %v135 = vadd.f32 %v60, %v134
    %v136 = vpop.f32.mrf.mxu0
    %v137 = vadd.f32 %v64, %v136
    %138 = vdwg.mxu0
    %139 = vst [vmem:[#allocation2] sm:$0xff] %v131
    %140 = vst [vmem:[#allocation2 + $0x8] sm:$0xff] %v133
    %141 = vst [vmem:[#allocation2 + $0x10] sm:$0xff] %v135
    %142 = vst [vmem:[#allocation2 + $0x18] sm:$0xff] %v137
    %v143 = vld [vmem:[#allocation2] sm:$0x3]
    %v144 = vld [vmem:[#allocation2 + $0x8] sm:$0x3]
    %v145 = vld [vmem:[%s2] sm:$0xff]
    %v146 = vld [vmem:[%s2 + $0x8] sm:$0xff]
    %v147 = vld [vmem:[%s2 + $0x10] sm:$0xff]
    %v148 = vld [vmem:[%s2 + $0x18] sm:$0xff]
    %v149 = vld [vmem:[%s2 + $0x20] sm:$0xff]
    %v150 = vld [vmem:[%s2 + $0x28] sm:$0xff]
    %v151 = vld [vmem:[%s2 + $0x30] sm:$0xff]
    %v152 = vld [vmem:[%s2 + $0x38] sm:$0xff]
    %v161 = vunpack.c.l.b16 %v145
    %v162 = vunpack.c.h.b16 %v145
    %v163 = vunpack.c.l.b16 %v146
    %v164 = vunpack.c.h.b16 %v146
    %v165 = vunpack.c.l.b16 %v147
    %v166 = vunpack.c.h.b16 %v147
    %v167 = vunpack.c.l.b16 %v148
    %v168 = vunpack.c.h.b16 %v148
    %v169 = vunpack.c.l.b16 %v149
    %v170 = vunpack.c.h.b16 %v149
    %v171 = vunpack.c.l.b16 %v150
    %v172 = vunpack.c.h.b16 %v150
    %v173 = vunpack.c.l.b16 %v151
    %v174 = vunpack.c.h.b16 %v151
    %v175 = vunpack.c.l.b16 %v152
    %v176 = vunpack.c.h.b16 %v152
    %v177 = vpack.c.b16 %v163, %v161
    %v178 = vpack.c.b16 %v164, %v162
    %v179 = vpack.c.b16 %v167, %v165
    %v180 = vpack.c.b16 %v168, %v166
    %v181 = vpack.c.b16 %v171, %v169
    %v182 = vpack.c.b16 %v172, %v170
    %v183 = vpack.c.b16 %v175, %v173
    %v184 = vpack.c.b16 %v176, %v174
    %vm193 = vcmask 523264
    %v195 = vsel %vm193, 0, 0
    %197 = vmatprep.subr.bf16.mxu0 0
    %198 = vmatpush1.bf16.msra.mxu0 0
    %199 = vmatprep.subr.bf16.mxu0 0
    %200 = vmatpush1.bf16.msra.mxu0 0
    %201 = vmatprep.subr.bf16.mxu0 0
    %202 = vmatpush1.bf16.msra.mxu0 0
    %203 = vmatprep.subr.bf16.mxu0 0
    %204 = vmatpush1.bf16.msra.mxu0 0
    %205 = vmatprep.subr.bf16.mxu0 %v184
    %206 = vmatpush1.bf16.msra.mxu0 %v183
    %207 = vmatprep.subr.bf16.mxu0 %v182
    %208 = vmatpush1.bf16.msra.mxu0 %v181
    %209 = vmatprep.subr.bf16.mxu0 %v180
    %210 = vmatpush1.bf16.msra.mxu0 %v179
    %211 = vmatprep.subr.bf16.mxu0 %v178
    %212 = vmatpush1.bf16.msra.mxu0 %v177
    %213 = vmatprep.subr.bf16.mxu0 0
    %214 = vmatpush2.bf16.msra.mxu0 0
    %215 = vmatprep.subr.bf16.mxu0 0
    %216 = vmatpush2.bf16.msra.mxu0 0
    %217 = vmatprep.subr.bf16.mxu0 0
    %218 = vmatpush2.bf16.msra.mxu0 0
    %219 = vmatprep.subr.bf16.mxu0 0
    %220 = vmatpush2.bf16.msra.mxu0 0
    %221 = vmatprep.subr.bf16.mxu0 0
    %222 = vmatpush2.bf16.msra.mxu0 0
    %223 = vmatprep.subr.bf16.mxu0 0
    %224 = vmatpush2.bf16.msra.mxu0 0
    %225 = vmatprep.subr.bf16.mxu0 0
    %226 = vmatpush2.bf16.msra.mxu0 0
    %227 = vmatprep.subr.bf16.mxu0 0
    %228 = vmatpush2.bf16.msra.mxu0 0
    %229 = vmatprep.mubr.bf16.mxu0 0
    %230 = vmatmul.mubr.bf16.gmra.mxu0 %v195
    %v231 = vpop.f32.mrf.mxu0
    %v232 = vadd.f32 0.0, %v231
    %v233 = vpop.f32.mrf.mxu0
    %v234 = vadd.f32 0.0, %v233
    %v235 = vpop.f32.mrf.mxu0
    %v236 = vpop.f32.mrf.mxu0
    %237 = vdwg.mxu0
    %v238 = vadd.f32 %v143, %v232
    %v239 = vadd.f32 %v144, %v234
    %v240 = vxor.u32 %v238, 2147483648
    %v241 = vxor.u32 %v239, 2147483648
    %v242 = vmul.f32 %v240, 1.442695
    %v243 = vpow.pop %v242
    %v244 = vmul.f32 %v241, 1.442695
    %v245 = vpow.pop %v244
    %v246 = vadd.f32 %v243, 1.0
    %v247 = vadd.f32 %v245, 1.0
    %v248 = vrcp.pop %v246
    %v249 = vmul.f32 1.0, %v248
    %v250 = vrcp.pop %v247
    %v251 = vmul.f32 1.0, %v250
    %v252 = vtanh.pop %v239
    %v253 = vmul.f32 %v249, 0.0
    %255 = vrot.lane.b32.xlu0 %v252, 64
    %v256 = vpop.permute.xlu0 %255
    %v258 = vmul.f32 %v249, %v256
    %260 = vrot.lane.b32.xlu0 %v258, 64
    %v261 = vpop.permute.xlu0 %260
    %v263 = vadd.f32 %v253, %v261
    %v264 = vtanh.pop %v263
    %266 = vrot.lane.b32.xlu0 %v264, 64
    %v267 = vpop.permute.xlu0 %266
    %v269 = vmul.f32 %v251, %v267
    %vm270 = vcmask 254976
    %271 = vst.msk [vmem:[#allocation3] sm:$0x3] %vm270, %v269
    %273 = vrot.lane.b32.xlu0 %v269, 96
    %v274 = vpop.permute.xlu0 %273
    %276 = vst.msk [vmem:[#allocation4 + $0xe] sm:$0x3] %vm270, %v274
    %v277 = vld [vmem:[#allocation2] sm:$0xc]
    %v278 = vld [vmem:[#allocation2 + $0x8] sm:$0xc]
    %v279 = vpack.c.bf16 %v269, %v269
    %v280 = vld [vmem:[%s2] sm:$0xff]
    %v281 = vld [vmem:[%s2 + $0x8] sm:$0xff]
    %v282 = vld [vmem:[%s2 + $0x10] sm:$0xff]
    %v283 = vld [vmem:[%s2 + $0x18] sm:$0xff]
    %v284 = vld [vmem:[%s2 + $0x20] sm:$0xff]
    %v285 = vld [vmem:[%s2 + $0x28] sm:$0xff]
    %v286 = vld [vmem:[%s2 + $0x30] sm:$0xff]
    %v287 = vld [vmem:[%s2 + $0x38] sm:$0xff]
    %v296 = vunpack.c.l.b16 %v280
    %v297 = vunpack.c.h.b16 %v280
    %v298 = vunpack.c.l.b16 %v281
    %v299 = vunpack.c.h.b16 %v281
    %v300 = vunpack.c.l.b16 %v282
    %v301 = vunpack.c.h.b16 %v282
    %v302 = vunpack.c.l.b16 %v283
    %v303 = vunpack.c.h.b16 %v283
    %v304 = vunpack.c.l.b16 %v284
    %v305 = vunpack.c.h.b16 %v284
    %v306 = vunpack.c.l.b16 %v285
    %v307 = vunpack.c.h.b16 %v285
    %v308 = vunpack.c.l.b16 %v286
    %v309 = vunpack.c.h.b16 %v286
    %v310 = vunpack.c.l.b16 %v287
    %v311 = vunpack.c.h.b16 %v287
    %v312 = vpack.c.b16 %v298, %v296
    %v313 = vpack.c.b16 %v299, %v297
    %v314 = vpack.c.b16 %v302, %v300
    %v315 = vpack.c.b16 %v303, %v301
    %v316 = vpack.c.b16 %v306, %v304
    %v317 = vpack.c.b16 %v307, %v305
    %v318 = vpack.c.b16 %v310, %v308
    %v319 = vpack.c.b16 %v311, %v309
    %v329 = vsel %vm193, %v279, 0
    %331 = vmatprep.subr.bf16.mxu0 0
    %332 = vmatpush1.bf16.msra.mxu0 0
    %333 = vmatprep.subr.bf16.mxu0 0
    %334 = vmatpush1.bf16.msra.mxu0 0
    %335 = vmatprep.subr.bf16.mxu0 0
    %336 = vmatpush1.bf16.msra.mxu0 0
    %337 = vmatprep.subr.bf16.mxu0 0
    %338 = vmatpush1.bf16.msra.mxu0 0
    %339 = vmatprep.subr.bf16.mxu0 %v319
    %340 = vmatpush1.bf16.msra.mxu0 %v318
    %341 = vmatprep.subr.bf16.mxu0 %v317
    %342 = vmatpush1.bf16.msra.mxu0 %v316
    %343 = vmatprep.subr.bf16.mxu0 %v315
    %344 = vmatpush1.bf16.msra.mxu0 %v314
    %345 = vmatprep.subr.bf16.mxu0 %v313
    %346 = vmatpush1.bf16.msra.mxu0 %v312
    %347 = vmatprep.subr.bf16.mxu0 0
    %348 = vmatpush2.bf16.msra.mxu0 0
    %349 = vmatprep.subr.bf16.mxu0 0
    %350 = vmatpush2.bf16.msra.mxu0 0
    %351 = vmatprep.subr.bf16.mxu0 0
    %352 = vmatpush2.bf16.msra.mxu0 0
    %353 = vmatprep.subr.bf16.mxu0 0
    %354 = vmatpush2.bf16.msra.mxu0 0
    %355 = vmatprep.subr.bf16.mxu0 0
    %356 = vmatpush2.bf16.msra.mxu0 0
    %357 = vmatprep.subr.bf16.mxu0 0
    %358 = vmatpush2.bf16.msra.mxu0 0
    %359 = vmatprep.subr.bf16.mxu0 0
    %360 = vmatpush2.bf16.msra.mxu0 0
    %361 = vmatprep.subr.bf16.mxu0 0
    %362 = vmatpush2.bf16.msra.mxu0 0
    %363 = vmatprep.mubr.bf16.mxu0 0
    %364 = vmatmul.mubr.bf16.gmra.mxu0 %v329
    %v365 = vpop.f32.mrf.mxu0
    %v366 = vadd.f32 0.0, %v365
    %v367 = vpop.f32.mrf.mxu0
    %v368 = vadd.f32 0.0, %v367
    %v369 = vpop.f32.mrf.mxu0
    %v370 = vpop.f32.mrf.mxu0
    %371 = vdwg.mxu0
    %v374 = vrot.slane %v366, 6
    %v375 = vrot.slane %v368, 6
    %v378 = vadd.f32 %v277, %v374
    %v379 = vadd.f32 %v278, %v375
    %v380 = vxor.u32 %v378, 2147483648
    %v381 = vxor.u32 %v379, 2147483648
    %v382 = vmul.f32 %v380, 1.442695
    %v383 = vpow.pop %v382
    %v384 = vmul.f32 %v381, 1.442695
    %v385 = vpow.pop %v384
    %v386 = vadd.f32 %v383, 1.0
    %v387 = vadd.f32 %v385, 1.0
    %v388 = vrcp.pop %v386
    %v389 = vmul.f32 1.0, %v388
    %v390 = vrcp.pop %v387
    %v391 = vmul.f32 1.0, %v390
    %v392 = vtanh.pop %v379
    %v394 = vrot.slane %v263, 6
    %v396 = vmul.f32 %v389, %v394
    %398 = vrot.lane.b32.xlu0 %v392, 64
    %v399 = vpop.permute.xlu0 %398
    %v401 = vmul.f32 %v389, %v399
    %403 = vrot.lane.b32.xlu0 %v401, 64
    %v404 = vpop.permute.xlu0 %403
    %v406 = vadd.f32 %v396, %v404
    %v407 = vtanh.pop %v406
    %409 = vrot.lane.b32.xlu0 %v407, 64
    %v410 = vpop.permute.xlu0 %409
    %v412 = vmul.f32 %v391, %v410
    %vm413 = vcmask 257026
    %414 = vst.msk [vmem:[#allocation3] sm:$0xc] %vm413, %v412
    %416 = vrot.lane.b32.xlu0 %v412, 96
    %v417 = vpop.permute.xlu0 %416
    %419 = vst.msk [vmem:[#allocation4 + $0xa] sm:$0xc] %vm413, %v417
    %v420 = vld [vmem:[#allocation2] sm:$0x30]
    %v421 = vld [vmem:[#allocation2 + $0x8] sm:$0x30]
    %v422 = vpack.c.bf16 %v412, %v412
    %v423 = vld [vmem:[%s2] sm:$0xff]
    %v424 = vld [vmem:[%s2 + $0x8] sm:$0xff]
    %v425 = vld [vmem:[%s2 + $0x10] sm:$0xff]
    %v426 = vld [vmem:[%s2 + $0x18] sm:$0xff]
    %v427 = vld [vmem:[%s2 + $0x20] sm:$0xff]
    %v428 = vld [vmem:[%s2 + $0x28] sm:$0xff]
    %v429 = vld [vmem:[%s2 + $0x30] sm:$0xff]
    %v430 = vld [vmem:[%s2 + $0x38] sm:$0xff]
    %v432 = vrot.slane %v422, 1
    %v441 = vunpack.c.l.b16 %v423
    %v442 = vunpack.c.h.b16 %v423
    %v443 = vunpack.c.l.b16 %v424
    %v444 = vunpack.c.h.b16 %v424
    %v445 = vunpack.c.l.b16 %v425
    %v446 = vunpack.c.h.b16 %v425
    %v447 = vunpack.c.l.b16 %v426
    %v448 = vunpack.c.h.b16 %v426
    %v449 = vunpack.c.l.b16 %v427
    %v450 = vunpack.c.h.b16 %v427
    %v451 = vunpack.c.l.b16 %v428
    %v452 = vunpack.c.h.b16 %v428
    %v453 = vunpack.c.l.b16 %v429
    %v454 = vunpack.c.h.b16 %v429
    %v455 = vunpack.c.l.b16 %v430
    %v456 = vunpack.c.h.b16 %v430
    %v457 = vpack.c.b16 %v443, %v441
    %v458 = vpack.c.b16 %v444, %v442
    %v459 = vpack.c.b16 %v447, %v445
    %v460 = vpack.c.b16 %v448, %v446
    %v461 = vpack.c.b16 %v451, %v449
    %v462 = vpack.c.b16 %v452, %v450
    %v463 = vpack.c.b16 %v455, %v453
    %v464 = vpack.c.b16 %v456, %v454
    %v474 = vsel %vm193, %v432, 0
    %476 = vmatprep.subr.bf16.mxu0 0
    %477 = vmatpush1.bf16.msra.mxu0 0
    %478 = vmatprep.subr.bf16.mxu0 0
    %479 = vmatpush1.bf16.msra.mxu0 0
    %480 = vmatprep.subr.bf16.mxu0 0
    %481 = vmatpush1.bf16.msra.mxu0 0
    %482 = vmatprep.subr.bf16.mxu0 0
    %483 = vmatpush1.bf16.msra.mxu0 0
    %484 = vmatprep.subr.bf16.mxu0 %v464
    %485 = vmatpush1.bf16.msra.mxu0 %v463
    %486 = vmatprep.subr.bf16.mxu0 %v462
    %487 = vmatpush1.bf16.msra.mxu0 %v461
    %488 = vmatprep.subr.bf16.mxu0 %v460
    %489 = vmatpush1.bf16.msra.mxu0 %v459
    %490 = vmatprep.subr.bf16.mxu0 %v458
    %491 = vmatpush1.bf16.msra.mxu0 %v457
    %492 = vmatprep.subr.bf16.mxu0 0
    %493 = vmatpush2.bf16.msra.mxu0 0
    %494 = vmatprep.subr.bf16.mxu0 0
    %495 = vmatpush2.bf16.msra.mxu0 0
    %496 = vmatprep.subr.bf16.mxu0 0
    %497 = vmatpush2.bf16.msra.mxu0 0
    %498 = vmatprep.subr.bf16.mxu0 0
    %499 = vmatpush2.bf16.msra.mxu0 0
    %500 = vmatprep.subr.bf16.mxu0 0
    %501 = vmatpush2.bf16.msra.mxu0 0
    %502 = vmatprep.subr.bf16.mxu0 0
    %503 = vmatpush2.bf16.msra.mxu0 0
    %504 = vmatprep.subr.bf16.mxu0 0
    %505 = vmatpush2.bf16.msra.mxu0 0
    %506 = vmatprep.subr.bf16.mxu0 0
    %507 = vmatpush2.bf16.msra.mxu0 0
    %508 = vmatprep.mubr.bf16.mxu0 0
    %509 = vmatmul.mubr.bf16.gmra.mxu0 %v474
    %v510 = vpop.f32.mrf.mxu0
    %v511 = vadd.f32 0.0, %v510
    %v512 = vpop.f32.mrf.mxu0
    %v513 = vadd.f32 0.0, %v512
    %v514 = vpop.f32.mrf.mxu0
    %v515 = vpop.f32.mrf.mxu0
    %516 = vdwg.mxu0
    %v519 = vrot.slane %v511, 4
    %v520 = vrot.slane %v513, 4
    %v523 = vadd.f32 %v420, %v519
    %v524 = vadd.f32 %v421, %v520
    %v525 = vxor.u32 %v523, 2147483648
    %v526 = vxor.u32 %v524, 2147483648
    %v527 = vmul.f32 %v525, 1.442695
    %v528 = vpow.pop %v527
    %v529 = vmul.f32 %v526, 1.442695
    %v530 = vpow.pop %v529
    %v531 = vadd.f32 %v528, 1.0
    %v532 = vadd.f32 %v530, 1.0
    %v533 = vrcp.pop %v531
    %v534 = vmul.f32 1.0, %v533
    %v535 = vrcp.pop %v532
    %v536 = vmul.f32 1.0, %v535
    %v537 = vtanh.pop %v524
    %v539 = vrot.slane %v406, 6
    %v541 = vmul.f32 %v534, %v539
    %543 = vrot.lane.b32.xlu0 %v537, 64
    %v544 = vpop.permute.xlu0 %543
    %v546 = vmul.f32 %v534, %v544
    %548 = vrot.lane.b32.xlu0 %v546, 64
    %v549 = vpop.permute.xlu0 %548
    %v551 = vadd.f32 %v541, %v549
    %v552 = vtanh.pop %v551
    %554 = vrot.lane.b32.xlu0 %v552, 64
    %v555 = vpop.permute.xlu0 %554
    %v557 = vmul.f32 %v536, %v555
    %vm558 = vcmask 259076
    %559 = vst.msk [vmem:[#allocation3] sm:$0x30] %vm558, %v557
    %561 = vrot.lane.b32.xlu0 %v557, 96
    %v562 = vpop.permute.xlu0 %561
    %564 = vst.msk [vmem:[#allocation4 + $0x6] sm:$0x30] %vm558, %v562
    %v565 = vld [vmem:[#allocation2] sm:$0xc0]
    %v566 = vld [vmem:[#allocation2 + $0x8] sm:$0xc0]
    %v567 = vpack.c.bf16 %v557, %v557
    %v568 = vld [vmem:[%s2] sm:$0xff]
    %v569 = vld [vmem:[%s2 + $0x8] sm:$0xff]
    %v570 = vld [vmem:[%s2 + $0x10] sm:$0xff]
    %v571 = vld [vmem:[%s2 + $0x18] sm:$0xff]
    %v572 = vld [vmem:[%s2 + $0x20] sm:$0xff]
    %v573 = vld [vmem:[%s2 + $0x28] sm:$0xff]
    %v574 = vld [vmem:[%s2 + $0x30] sm:$0xff]
    %v575 = vld [vmem:[%s2 + $0x38] sm:$0xff]
    %v577 = vrot.slane %v567, 2
    %v586 = vunpack.c.l.b16 %v568
    %v587 = vunpack.c.h.b16 %v568
    %v588 = vunpack.c.l.b16 %v569
    %v589 = vunpack.c.h.b16 %v569
    %v590 = vunpack.c.l.b16 %v570
    %v591 = vunpack.c.h.b16 %v570
    %v592 = vunpack.c.l.b16 %v571
    %v593 = vunpack.c.h.b16 %v571
    %v594 = vunpack.c.l.b16 %v572
    %v595 = vunpack.c.h.b16 %v572
    %v596 = vunpack.c.l.b16 %v573
    %v597 = vunpack.c.h.b16 %v573
    %v598 = vunpack.c.l.b16 %v574
    %v599 = vunpack.c.h.b16 %v574
    %v600 = vunpack.c.l.b16 %v575
    %v601 = vunpack.c.h.b16 %v575
    %v602 = vpack.c.b16 %v588, %v586
    %v603 = vpack.c.b16 %v589, %v587
    %v604 = vpack.c.b16 %v592, %v590
    %v605 = vpack.c.b16 %v593, %v591
    %v606 = vpack.c.b16 %v596, %v594
    %v607 = vpack.c.b16 %v597, %v595
    %v608 = vpack.c.b16 %v600, %v598
    %v609 = vpack.c.b16 %v601, %v599
    %v619 = vsel %vm193, %v577, 0
    %621 = vmatprep.subr.bf16.mxu0 0
    %622 = vmatpush1.bf16.msra.mxu0 0
    %623 = vmatprep.subr.bf16.mxu0 0
    %624 = vmatpush1.bf16.msra.mxu0 0
    %625 = vmatprep.subr.bf16.mxu0 0
    %626 = vmatpush1.bf16.msra.mxu0 0
    %627 = vmatprep.subr.bf16.mxu0 0
    %628 = vmatpush1.bf16.msra.mxu0 0
    %629 = vmatprep.subr.bf16.mxu0 %v609
    %630 = vmatpush1.bf16.msra.mxu0 %v608
    %631 = vmatprep.subr.bf16.mxu0 %v607
    %632 = vmatpush1.bf16.msra.mxu0 %v606
    %633 = vmatprep.subr.bf16.mxu0 %v605
    %634 = vmatpush1.bf16.msra.mxu0 %v604
    %635 = vmatprep.subr.bf16.mxu0 %v603
    %636 = vmatpush1.bf16.msra.mxu0 %v602
    %637 = vmatprep.subr.bf16.mxu0 0
    %638 = vmatpush2.bf16.msra.mxu0 0
    %639 = vmatprep.subr.bf16.mxu0 0
    %640 = vmatpush2.bf16.msra.mxu0 0
    %641 = vmatprep.subr.bf16.mxu0 0
    %642 = vmatpush2.bf16.msra.mxu0 0
    %643 = vmatprep.subr.bf16.mxu0 0
    %644 = vmatpush2.bf16.msra.mxu0 0
    %645 = vmatprep.subr.bf16.mxu0 0
    %646 = vmatpush2.bf16.msra.mxu0 0
    %647 = vmatprep.subr.bf16.mxu0 0
    %648 = vmatpush2.bf16.msra.mxu0 0
    %649 = vmatprep.subr.bf16.mxu0 0
    %650 = vmatpush2.bf16.msra.mxu0 0
    %651 = vmatprep.subr.bf16.mxu0 0
    %652 = vmatpush2.bf16.msra.mxu0 0
    %653 = vmatprep.mubr.bf16.mxu0 0
    %654 = vmatmul.mubr.bf16.gmra.mxu0 %v619
    %v655 = vpop.f32.mrf.mxu0
    %v656 = vadd.f32 0.0, %v655
    %v657 = vpop.f32.mrf.mxu0
    %v658 = vadd.f32 0.0, %v657
    %v659 = vpop.f32.mrf.mxu0
    %v660 = vpop.f32.mrf.mxu0
    %661 = vdwg.mxu0
    %v664 = vrot.slane %v656, 2
    %v665 = vrot.slane %v658, 2
    %v668 = vadd.f32 %v565, %v664
    %v669 = vadd.f32 %v566, %v665
    %v670 = vxor.u32 %v668, 2147483648
    %v671 = vxor.u32 %v669, 2147483648
    %v672 = vmul.f32 %v670, 1.442695
    %v673 = vpow.pop %v672
    %v674 = vmul.f32 %v671, 1.442695
    %v675 = vpow.pop %v674
    %v676 = vadd.f32 %v673, 1.0
    %v677 = vadd.f32 %v675, 1.0
    %v678 = vrcp.pop %v676
    %v679 = vmul.f32 1.0, %v678
    %v680 = vrcp.pop %v677
    %v681 = vmul.f32 1.0, %v680
    %v682 = vtanh.pop %v669
    %v684 = vrot.slane %v551, 6
    %v686 = vmul.f32 %v679, %v684
    %688 = vrot.lane.b32.xlu0 %v682, 64
    %v689 = vpop.permute.xlu0 %688
    %v691 = vmul.f32 %v679, %v689
    %693 = vrot.lane.b32.xlu0 %v691, 64
    %v694 = vpop.permute.xlu0 %693
    %v696 = vadd.f32 %v686, %v694
    %v697 = vtanh.pop %v696
    %699 = vrot.lane.b32.xlu0 %v697, 64
    %v700 = vpop.permute.xlu0 %699
    %v702 = vmul.f32 %v681, %v700
    %vm703 = vcmask 261126
    %704 = vst.msk [vmem:[#allocation3] sm:$0xc0] %vm703, %v702
    %706 = vrot.lane.b32.xlu0 %v702, 96
    %v707 = vpop.permute.xlu0 %706
    %709 = vst.msk [vmem:[#allocation4 + $0x2] sm:$0xc0] %vm703, %v707
    %v710 = vld [vmem:[#allocation2 + $0x10] sm:$0x3]
    %v711 = vld [vmem:[#allocation2 + $0x18] sm:$0x3]
    %v712 = vpack.c.bf16 %v702, %v702
    %v713 = vld [vmem:[%s2] sm:$0xff]
    %v714 = vld [vmem:[%s2 + $0x8] sm:$0xff]
    %v715 = vld [vmem:[%s2 + $0x10] sm:$0xff]
    %v716 = vld [vmem:[%s2 + $0x18] sm:$0xff]
    %v717 = vld [vmem:[%s2 + $0x20] sm:$0xff]
    %v718 = vld [vmem:[%s2 + $0x28] sm:$0xff]
    %v719 = vld [vmem:[%s2 + $0x30] sm:$0xff]
    %v720 = vld [vmem:[%s2 + $0x38] sm:$0xff]
    %v722 = vrot.slane %v712, 3
    %v731 = vunpack.c.l.b16 %v713
    %v732 = vunpack.c.h.b16 %v713
    %v733 = vunpack.c.l.b16 %v714
    %v734 = vunpack.c.h.b16 %v714
    %v735 = vunpack.c.l.b16 %v715
    %v736 = vunpack.c.h.b16 %v715
    %v737 = vunpack.c.l.b16 %v716
    %v738 = vunpack.c.h.b16 %v716
    %v739 = vunpack.c.l.b16 %v717
    %v740 = vunpack.c.h.b16 %v717
    %v741 = vunpack.c.l.b16 %v718
    %v742 = vunpack.c.h.b16 %v718
    %v743 = vunpack.c.l.b16 %v719
    %v744 = vunpack.c.h.b16 %v719
    %v745 = vunpack.c.l.b16 %v720
    %v746 = vunpack.c.h.b16 %v720
    %v747 = vpack.c.b16 %v733, %v731
    %v748 = vpack.c.b16 %v734, %v732
    %v749 = vpack.c.b16 %v737, %v735
    %v750 = vpack.c.b16 %v738, %v736
    %v751 = vpack.c.b16 %v741, %v739
    %v752 = vpack.c.b16 %v742, %v740
    %v753 = vpack.c.b16 %v745, %v743
    %v754 = vpack.c.b16 %v746, %v744
    %v764 = vsel %vm193, %v722, 0
    %766 = vmatprep.subr.bf16.mxu0 0
    %767 = vmatpush1.bf16.msra.mxu0 0
    %768 = vmatprep.subr.bf16.mxu0 0
    %769 = vmatpush1.bf16.msra.mxu0 0
    %770 = vmatprep.subr.bf16.mxu0 0
    %771 = vmatpush1.bf16.msra.mxu0 0
    %772 = vmatprep.subr.bf16.mxu0 0
    %773 = vmatpush1.bf16.msra.mxu0 0
    %774 = vmatprep.subr.bf16.mxu0 %v754
    %775 = vmatpush1.bf16.msra.mxu0 %v753
    %776 = vmatprep.subr.bf16.mxu0 %v752
    %777 = vmatpush1.bf16.msra.mxu0 %v751
    %778 = vmatprep.subr.bf16.mxu0 %v750
    %779 = vmatpush1.bf16.msra.mxu0 %v749
    %780 = vmatprep.subr.bf16.mxu0 %v748
    %781 = vmatpush1.bf16.msra.mxu0 %v747
    %782 = vmatprep.subr.bf16.mxu0 0
    %783 = vmatpush2.bf16.msra.mxu0 0
    %784 = vmatprep.subr.bf16.mxu0 0
    %785 = vmatpush2.bf16.msra.mxu0 0
    %786 = vmatprep.subr.bf16.mxu0 0
    %787 = vmatpush2.bf16.msra.mxu0 0
    %788 = vmatprep.subr.bf16.mxu0 0
    %789 = vmatpush2.bf16.msra.mxu0 0
    %790 = vmatprep.subr.bf16.mxu0 0
    %791 = vmatpush2.bf16.msra.mxu0 0
    %792 = vmatprep.subr.bf16.mxu0 0
    %793 = vmatpush2.bf16.msra.mxu0 0
    %794 = vmatprep.subr.bf16.mxu0 0
    %795 = vmatpush2.bf16.msra.mxu0 0
    %796 = vmatprep.subr.bf16.mxu0 0
    %797 = vmatpush2.bf16.msra.mxu0 0
    %798 = vmatprep.mubr.bf16.mxu0 0
    %799 = vmatmul.mubr.bf16.gmra.mxu0 %v764
    %v800 = vpop.f32.mrf.mxu0
    %v801 = vadd.f32 0.0, %v800
    %v802 = vpop.f32.mrf.mxu0
    %v803 = vadd.f32 0.0, %v802
    %v804 = vpop.f32.mrf.mxu0
    %v805 = vpop.f32.mrf.mxu0
    %806 = vdwg.mxu0
    %v807 = vadd.f32 %v710, %v801
    %v808 = vadd.f32 %v711, %v803
    %v809 = vxor.u32 %v807, 2147483648
    %v810 = vxor.u32 %v808, 2147483648
    %v811 = vmul.f32 %v809, 1.442695
    %v812 = vpow.pop %v811
    %v813 = vmul.f32 %v810, 1.442695
    %v814 = vpow.pop %v813
    %v815 = vadd.f32 %v812, 1.0
    %v816 = vadd.f32 %v814, 1.0
    %v817 = vrcp.pop %v815
    %v818 = vmul.f32 1.0, %v817
    %v819 = vrcp.pop %v816
    %v820 = vmul.f32 1.0, %v819
    %v821 = vtanh.pop %v808
    %v823 = vrot.slane %v696, 6
    %v825 = vmul.f32 %v818, %v823
    %827 = vrot.lane.b32.xlu0 %v821, 64
    %v828 = vpop.permute.xlu0 %827
    %v830 = vmul.f32 %v818, %v828
    %832 = vrot.lane.b32.xlu0 %v830, 64
    %v833 = vpop.permute.xlu0 %832
    %v835 = vadd.f32 %v825, %v833
    %v836 = vtanh.pop %v835
    %838 = vrot.lane.b32.xlu0 %v836, 64
    %v839 = vpop.permute.xlu0 %838
    %v841 = vmul.f32 %v820, %v839
    %842 = vst.msk [vmem:[#allocation3 + $0x8] sm:$0x3] %vm270, %v841
    %844 = vrot.lane.b32.xlu0 %v841, 96
    %v845 = vpop.permute.xlu0 %844
    %847 = vst.msk [vmem:[#allocation4 + $0x6] sm:$0x3] %vm270, %v845
    %v848 = vld [vmem:[#allocation2 + $0x10] sm:$0xc]
    %v849 = vld [vmem:[#allocation2 + $0x18] sm:$0xc]
    %v850 = vpack.c.bf16 %v841, %v841
    %v851 = vld [vmem:[%s2] sm:$0xff]
    %v852 = vld [vmem:[%s2 + $0x8] sm:$0xff]
    %v853 = vld [vmem:[%s2 + $0x10] sm:$0xff]
    %v854 = vld [vmem:[%s2 + $0x18] sm:$0xff]
    %v855 = vld [vmem:[%s2 + $0x20] sm:$0xff]
    %v856 = vld [vmem:[%s2 + $0x28] sm:$0xff]
    %v857 = vld [vmem:[%s2 + $0x30] sm:$0xff]
    %v858 = vld [vmem:[%s2 + $0x38] sm:$0xff]
    %v867 = vunpack.c.l.b16 %v851
    %v868 = vunpack.c.h.b16 %v851
    %v869 = vunpack.c.l.b16 %v852
    %v870 = vunpack.c.h.b16 %v852
    %v871 = vunpack.c.l.b16 %v853
    %v872 = vunpack.c.h.b16 %v853
    %v873 = vunpack.c.l.b16 %v854
    %v874 = vunpack.c.h.b16 %v854
    %v875 = vunpack.c.l.b16 %v855
    %v876 = vunpack.c.h.b16 %v855
    %v877 = vunpack.c.l.b16 %v856
    %v878 = vunpack.c.h.b16 %v856
    %v879 = vunpack.c.l.b16 %v857
    %v880 = vunpack.c.h.b16 %v857
    %v881 = vunpack.c.l.b16 %v858
    %v882 = vunpack.c.h.b16 %v858
    %v883 = vpack.c.b16 %v869, %v867
    %v884 = vpack.c.b16 %v870, %v868
    %v885 = vpack.c.b16 %v873, %v871
    %v886 = vpack.c.b16 %v874, %v872
    %v887 = vpack.c.b16 %v877, %v875
    %v888 = vpack.c.b16 %v878, %v876
    %v889 = vpack.c.b16 %v881, %v879
    %v890 = vpack.c.b16 %v882, %v880
    %v900 = vsel %vm193, %v850, 0
    %902 = vmatprep.subr.bf16.mxu0 0
    %903 = vmatpush1.bf16.msra.mxu0 0
    %904 = vmatprep.subr.bf16.mxu0 0
    %905 = vmatpush1.bf16.msra.mxu0 0
    %906 = vmatprep.subr.bf16.mxu0 0
    %907 = vmatpush1.bf16.msra.mxu0 0
    %908 = vmatprep.subr.bf16.mxu0 0
    %909 = vmatpush1.bf16.msra.mxu0 0
    %910 = vmatprep.subr.bf16.mxu0 %v890
    %911 = vmatpush1.bf16.msra.mxu0 %v889
    %912 = vmatprep.subr.bf16.mxu0 %v888
    %913 = vmatpush1.bf16.msra.mxu0 %v887
    %914 = vmatprep.subr.bf16.mxu0 %v886
    %915 = vmatpush1.bf16.msra.mxu0 %v885
    %916 = vmatprep.subr.bf16.mxu0 %v884
    %917 = vmatpush1.bf16.msra.mxu0 %v883
    %918 = vmatprep.subr.bf16.mxu0 0
    %919 = vmatpush2.bf16.msra.mxu0 0
    %920 = vmatprep.subr.bf16.mxu0 0
    %921 = vmatpush2.bf16.msra.mxu0 0
    %922 = vmatprep.subr.bf16.mxu0 0
    %923 = vmatpush2.bf16.msra.mxu0 0
    %924 = vmatprep.subr.bf16.mxu0 0
    %925 = vmatpush2.bf16.msra.mxu0 0
    %926 = vmatprep.subr.bf16.mxu0 0
    %927 = vmatpush2.bf16.msra.mxu0 0
    %928 = vmatprep.subr.bf16.mxu0 0
    %929 = vmatpush2.bf16.msra.mxu0 0
    %930 = vmatprep.subr.bf16.mxu0 0
    %931 = vmatpush2.bf16.msra.mxu0 0
    %932 = vmatprep.subr.bf16.mxu0 0
    %933 = vmatpush2.bf16.msra.mxu0 0
    %934 = vmatprep.mubr.bf16.mxu0 0
    %935 = vmatmul.mubr.bf16.gmra.mxu0 %v900
    %v936 = vpop.f32.mrf.mxu0
    %v937 = vadd.f32 0.0, %v936
    %v938 = vpop.f32.mrf.mxu0
    %v939 = vadd.f32 0.0, %v938
    %v940 = vpop.f32.mrf.mxu0
    %v941 = vpop.f32.mrf.mxu0
    %942 = vdwg.mxu0
    %v945 = vrot.slane %v937, 6
    %v946 = vrot.slane %v939, 6
    %v949 = vadd.f32 %v848, %v945
    %v950 = vadd.f32 %v849, %v946
    %v951 = vxor.u32 %v949, 2147483648
    %v952 = vxor.u32 %v950, 2147483648
    %v953 = vmul.f32 %v951, 1.442695
    %v954 = vpow.pop %v953
    %v955 = vmul.f32 %v952, 1.442695
    %v956 = vpow.pop %v955
    %v957 = vadd.f32 %v954, 1.0
    %v958 = vadd.f32 %v956, 1.0
    %v959 = vrcp.pop %v957
    %v960 = vmul.f32 1.0, %v959
    %v961 = vrcp.pop %v958
    %v962 = vmul.f32 1.0, %v961
    %v963 = vtanh.pop %v950
    %v965 = vrot.slane %v835, 6
    %v967 = vmul.f32 %v960, %v965
    %969 = vrot.lane.b32.xlu0 %v963, 64
    %v970 = vpop.permute.xlu0 %969
    %v972 = vmul.f32 %v960, %v970
    %974 = vrot.lane.b32.xlu0 %v972, 64
    %v975 = vpop.permute.xlu0 %974
    %v977 = vadd.f32 %v967, %v975
    %v978 = vtanh.pop %v977
    %980 = vrot.lane.b32.xlu0 %v978, 64
    %v981 = vpop.permute.xlu0 %980
    %v983 = vmul.f32 %v962, %v981
    %984 = vst.msk [vmem:[#allocation3 + $0x8] sm:$0xc] %vm413, %v983
    %986 = vrot.lane.b32.xlu0 %v983, 96
    %v987 = vpop.permute.xlu0 %986
    %989 = vst.msk [vmem:[#allocation4 + $0x2] sm:$0xc] %vm413, %v987
    %v990 = vld [vmem:[#allocation2 + $0x10] sm:$0x30]
    %v991 = vld [vmem:[#allocation2 + $0x18] sm:$0x30]
    %v992 = vpack.c.bf16 %v983, %v983
    %v993 = vld [vmem:[%s2] sm:$0xff]
    %v994 = vld [vmem:[%s2 + $0x8] sm:$0xff]
    %v995 = vld [vmem:[%s2 + $0x10] sm:$0xff]
    %v996 = vld [vmem:[%s2 + $0x18] sm:$0xff]
    %v997 = vld [vmem:[%s2 + $0x20] sm:$0xff]
    %v998 = vld [vmem:[%s2 + $0x28] sm:$0xff]
    %v999 = vld [vmem:[%s2 + $0x30] sm:$0xff]
    %v1000 = vld [vmem:[%s2 + $0x38] sm:$0xff]
    %v1002 = vrot.slane %v992, 1
    %v1011 = vunpack.c.l.b16 %v993
    %v1012 = vunpack.c.h.b16 %v993
    %v1013 = vunpack.c.l.b16 %v994
    %v1014 = vunpack.c.h.b16 %v994
    %v1015 = vunpack.c.l.b16 %v995
    %v1016 = vunpack.c.h.b16 %v995
    %v1017 = vunpack.c.l.b16 %v996
    %v1018 = vunpack.c.h.b16 %v996
    %v1019 = vunpack.c.l.b16 %v997
    %v1020 = vunpack.c.h.b16 %v997
    %v1021 = vunpack.c.l.b16 %v998
    %v1022 = vunpack.c.h.b16 %v998
    %v1023 = vunpack.c.l.b16 %v999
    %v1024 = vunpack.c.h.b16 %v999
    %v1025 = vunpack.c.l.b16 %v1000
    %v1026 = vunpack.c.h.b16 %v1000
    %v1027 = vpack.c.b16 %v1013, %v1011
    %v1028 = vpack.c.b16 %v1014, %v1012
    %v1029 = vpack.c.b16 %v1017, %v1015
    %v1030 = vpack.c.b16 %v1018, %v1016
    %v1031 = vpack.c.b16 %v1021, %v1019
    %v1032 = vpack.c.b16 %v1022, %v1020
    %v1033 = vpack.c.b16 %v1025, %v1023
    %v1034 = vpack.c.b16 %v1026, %v1024
    %v1044 = vsel %vm193, %v1002, 0
    %1046 = vmatprep.subr.bf16.mxu0 0
    %1047 = vmatpush1.bf16.msra.mxu0 0
    %1048 = vmatprep.subr.bf16.mxu0 0
    %1049 = vmatpush1.bf16.msra.mxu0 0
    %1050 = vmatprep.subr.bf16.mxu0 0
    %1051 = vmatpush1.bf16.msra.mxu0 0
    %1052 = vmatprep.subr.bf16.mxu0 0
    %1053 = vmatpush1.bf16.msra.mxu0 0
    %1054 = vmatprep.subr.bf16.mxu0 %v1034
    %1055 = vmatpush1.bf16.msra.mxu0 %v1033
    %1056 = vmatprep.subr.bf16.mxu0 %v1032
    %1057 = vmatpush1.bf16.msra.mxu0 %v1031
    %1058 = vmatprep.subr.bf16.mxu0 %v1030
    %1059 = vmatpush1.bf16.msra.mxu0 %v1029
    %1060 = vmatprep.subr.bf16.mxu0 %v1028
    %1061 = vmatpush1.bf16.msra.mxu0 %v1027
    %1062 = vmatprep.subr.bf16.mxu0 0
    %1063 = vmatpush2.bf16.msra.mxu0 0
    %1064 = vmatprep.subr.bf16.mxu0 0
    %1065 = vmatpush2.bf16.msra.mxu0 0
    %1066 = vmatprep.subr.bf16.mxu0 0
    %1067 = vmatpush2.bf16.msra.mxu0 0
    %1068 = vmatprep.subr.bf16.mxu0 0
    %1069 = vmatpush2.bf16.msra.mxu0 0
    %1070 = vmatprep.subr.bf16.mxu0 0
    %1071 = vmatpush2.bf16.msra.mxu0 0
    %1072 = vmatprep.subr.bf16.mxu0 0
    %1073 = vmatpush2.bf16.msra.mxu0 0
    %1074 = vmatprep.subr.bf16.mxu0 0
    %1075 = vmatpush2.bf16.msra.mxu0 0
    %1076 = vmatprep.subr.bf16.mxu0 0
    %1077 = vmatpush2.bf16.msra.mxu0 0
    %1078 = vmatprep.mubr.bf16.mxu0 0
    %1079 = vmatmul.mubr.bf16.gmra.mxu0 %v1044
    %v1080 = vpop.f32.mrf.mxu0
    %v1081 = vadd.f32 0.0, %v1080
    %v1082 = vpop.f32.mrf.mxu0
    %v1083 = vadd.f32 0.0, %v1082
    %v1084 = vpop.f32.mrf.mxu0
    %v1085 = vpop.f32.mrf.mxu0
    %1086 = vdwg.mxu0
    %v1089 = vrot.slane %v1081, 4
    %v1090 = vrot.slane %v1083, 4
    %v1093 = vadd.f32 %v990, %v1089
    %v1094 = vadd.f32 %v991, %v1090
    %v1095 = vxor.u32 %v1093, 2147483648
    %v1096 = vxor.u32 %v1094, 2147483648
    %v1097 = vmul.f32 %v1095, 1.442695
    %v1098 = vpow.pop %v1097
    %v1099 = vmul.f32 %v1096, 1.442695
    %v1100 = vpow.pop %v1099
    %v1101 = vadd.f32 %v1098, 1.0
    %v1102 = vadd.f32 %v1100, 1.0
    %v1103 = vrcp.pop %v1101
    %v1104 = vmul.f32 1.0, %v1103
    %v1105 = vrcp.pop %v1102
    %v1106 = vmul.f32 1.0, %v1105
    %v1107 = vtanh.pop %v1094
    %v1109 = vrot.slane %v977, 6
    %v1111 = vmul.f32 %v1104, %v1109
    %1113 = vrot.lane.b32.xlu0 %v1107, 64
    %v1114 = vpop.permute.xlu0 %1113
    %v1116 = vmul.f32 %v1104, %v1114
    %1118 = vrot.lane.b32.xlu0 %v1116, 64
    %v1119 = vpop.permute.xlu0 %1118
    %v1121 = vadd.f32 %v1111, %v1119
    %v1122 = vtanh.pop %v1121
    %1124 = vrot.lane.b32.xlu0 %v1122, 64
    %v1125 = vpop.permute.xlu0 %1124
    %v1127 = vmul.f32 %v1106, %v1125
    %1128 = vst.msk [vmem:[#allocation3 + $0x8] sm:$0x30] %vm558, %v1127
    %1130 = vrot.lane.b32.xlu0 %v1127, 96
    %v1131 = vpop.permute.xlu0 %1130
    %1133 = vst.msk [vmem:[#allocation4 - $0x2] sm:$0x30] %vm558, %v1131
    %v1134 = vld [vmem:[#allocation2 + $0x10] sm:$0xc0]
    %v1135 = vld [vmem:[#allocation2 + $0x18] sm:$0xc0]
    %v1136 = vpack.c.bf16 %v1127, %v1127
    %v1137 = vld [vmem:[%s2] sm:$0xff]
    %v1138 = vld [vmem:[%s2 + $0x8] sm:$0xff]
    %v1139 = vld [vmem:[%s2 + $0x10] sm:$0xff]
    %v1140 = vld [vmem:[%s2 + $0x18] sm:$0xff]
    %v1141 = vld [vmem:[%s2 + $0x20] sm:$0xff]
    %v1142 = vld [vmem:[%s2 + $0x28] sm:$0xff]
    %v1143 = vld [vmem:[%s2 + $0x30] sm:$0xff]
    %v1144 = vld [vmem:[%s2 + $0x38] sm:$0xff]
    %v1146 = vrot.slane %v1136, 2
    %v1155 = vunpack.c.l.b16 %v1137
    %v1156 = vunpack.c.h.b16 %v1137
    %v1157 = vunpack.c.l.b16 %v1138
    %v1158 = vunpack.c.h.b16 %v1138
    %v1159 = vunpack.c.l.b16 %v1139
    %v1160 = vunpack.c.h.b16 %v1139
    %v1161 = vunpack.c.l.b16 %v1140
    %v1162 = vunpack.c.h.b16 %v1140
    %v1163 = vunpack.c.l.b16 %v1141
    %v1164 = vunpack.c.h.b16 %v1141
    %v1165 = vunpack.c.l.b16 %v1142
    %v1166 = vunpack.c.h.b16 %v1142
    %v1167 = vunpack.c.l.b16 %v1143
    %v1168 = vunpack.c.h.b16 %v1143
    %v1169 = vunpack.c.l.b16 %v1144
    %v1170 = vunpack.c.h.b16 %v1144
    %v1171 = vpack.c.b16 %v1157, %v1155
    %v1172 = vpack.c.b16 %v1158, %v1156
    %v1173 = vpack.c.b16 %v1161, %v1159
    %v1174 = vpack.c.b16 %v1162, %v1160
    %v1175 = vpack.c.b16 %v1165, %v1163
    %v1176 = vpack.c.b16 %v1166, %v1164
    %v1177 = vpack.c.b16 %v1169, %v1167
    %v1178 = vpack.c.b16 %v1170, %v1168
    %v1188 = vsel %vm193, %v1146, 0
    %1190 = vmatprep.subr.bf16.mxu0 0
    %1191 = vmatpush1.bf16.msra.mxu0 0
    %1192 = vmatprep.subr.bf16.mxu0 0
    %1193 = vmatpush1.bf16.msra.mxu0 0
    %1194 = vmatprep.subr.bf16.mxu0 0
    %1195 = vmatpush1.bf16.msra.mxu0 0
    %1196 = vmatprep.subr.bf16.mxu0 0
    %1197 = vmatpush1.bf16.msra.mxu0 0
    %1198 = vmatprep.subr.bf16.mxu0 %v1178
    %1199 = vmatpush1.bf16.msra.mxu0 %v1177
    %1200 = vmatprep.subr.bf16.mxu0 %v1176
    %1201 = vmatpush1.bf16.msra.mxu0 %v1175
    %1202 = vmatprep.subr.bf16.mxu0 %v1174
    %1203 = vmatpush1.bf16.msra.mxu0 %v1173
    %1204 = vmatprep.subr.bf16.mxu0 %v1172
    %1205 = vmatpush1.bf16.msra.mxu0 %v1171
    %1206 = vmatprep.subr.bf16.mxu0 0
    %1207 = vmatpush2.bf16.msra.mxu0 0
    %1208 = vmatprep.subr.bf16.mxu0 0
    %1209 = vmatpush2.bf16.msra.mxu0 0
    %1210 = vmatprep.subr.bf16.mxu0 0
    %1211 = vmatpush2.bf16.msra.mxu0 0
    %1212 = vmatprep.subr.bf16.mxu0 0
    %1213 = vmatpush2.bf16.msra.mxu0 0
    %1214 = vmatprep.subr.bf16.mxu0 0
    %1215 = vmatpush2.bf16.msra.mxu0 0
    %1216 = vmatprep.subr.bf16.mxu0 0
    %1217 = vmatpush2.bf16.msra.mxu0 0
    %1218 = vmatprep.subr.bf16.mxu0 0
    %1219 = vmatpush2.bf16.msra.mxu0 0
    %1220 = vmatprep.subr.bf16.mxu0 0
    %1221 = vmatpush2.bf16.msra.mxu0 0
    %1222 = vmatprep.mubr.bf16.mxu0 0
    %1223 = vmatmul.mubr.bf16.gmra.mxu0 %v1188
    %v1224 = vpop.f32.mrf.mxu0
    %v1225 = vadd.f32 0.0, %v1224
    %v1226 = vpop.f32.mrf.mxu0
    %v1227 = vadd.f32 0.0, %v1226
    %v1228 = vpop.f32.mrf.mxu0
    %v1229 = vpop.f32.mrf.mxu0
    %1230 = vdwg.mxu0
    %v1233 = vrot.slane %v1225, 2
    %v1234 = vrot.slane %v1227, 2
    %v1237 = vadd.f32 %v1134, %v1233
    %v1238 = vadd.f32 %v1135, %v1234
    %v1239 = vxor.u32 %v1237, 2147483648
    %v1240 = vxor.u32 %v1238, 2147483648
    %v1241 = vmul.f32 %v1239, 1.442695
    %v1242 = vpow.pop %v1241
    %v1243 = vmul.f32 %v1240, 1.442695
    %v1244 = vpow.pop %v1243
    %v1245 = vadd.f32 %v1242, 1.0
    %v1246 = vadd.f32 %v1244, 1.0
    %v1247 = vrcp.pop %v1245
    %v1248 = vmul.f32 1.0, %v1247
    %v1249 = vrcp.pop %v1246
    %v1250 = vmul.f32 1.0, %v1249
    %v1251 = vtanh.pop %v1238
    %v1253 = vrot.slane %v1121, 6
    %v1255 = vmul.f32 %v1248, %v1253
    %1257 = vrot.lane.b32.xlu0 %v1251, 64
    %v1258 = vpop.permute.xlu0 %1257
    %v1260 = vmul.f32 %v1248, %v1258
    %1262 = vrot.lane.b32.xlu0 %v1260, 64
    %v1263 = vpop.permute.xlu0 %1262
    %v1265 = vadd.f32 %v1255, %v1263
    %v1266 = vtanh.pop %v1265
    %1268 = vrot.lane.b32.xlu0 %v1266, 64
    %v1269 = vpop.permute.xlu0 %1268
    %v1271 = vmul.f32 %v1250, %v1269
    %1272 = vst.msk [vmem:[#allocation3 + $0x8] sm:$0xc0] %vm703, %v1271
    %1274 = vrot.lane.b32.xlu0 %v1271, 96
    %v1275 = vpop.permute.xlu0 %1274
    %1277 = vst.msk [vmem:[#allocation4 - $0x6] sm:$0xc0] %vm703, %v1275
    %v1278 = vld [vmem:[#allocation3] sm:$0xff]
    %v1279 = vld [vmem:[#allocation3 + $0x8] sm:$0xff]
    %v1280 = vpack.c.bf16 %v1279, %v1278
    %v1281 = vld [vmem:[%s4] sm:$0xf]
    %v1282 = vld [vmem:[%s4 + $0x4] sm:$0xf]
    %v1283 = vld [vmem:[%s4 + $0x8] sm:$0xf]
    %v1284 = vld [vmem:[%s4 + $0xc] sm:$0xf]
    %v1285 = vld [vmem:[#allocation4] sm:$0xff]
    %v1286 = vld [vmem:[#allocation4 + $0x8] sm:$0xff]
    %v1287 = vpack.c.bf16 %v1286, %v1285
    %v1288 = vld [vmem:[%s5] sm:$0xf]
    %v1289 = vld [vmem:[%s5 + $0x4] sm:$0xf]
    %v1290 = vld [vmem:[%s5 + $0x8] sm:$0xf]
    %v1291 = vld [vmem:[%s5 + $0xc] sm:$0xf]
    %v1296 = vunpack.c.l.b16 %v1288
    %v1297 = vunpack.c.l.b16 %v1289
    %v1298 = vunpack.c.l.b16 %v1290
    %v1299 = vunpack.c.l.b16 %v1291
    %v1300 = vpack.c.b16 %v1297, %v1296
    %v1301 = vpack.c.b16 %v1299, %v1298
    %v1305 = vsel %vm92, %v1287, 0
    %1307 = vmatprep.subr.bf16.mxu0 0
    %1308 = vmatpush1.bf16.msra.mxu0 0
    %1309 = vmatprep.subr.bf16.mxu0 0
    %1310 = vmatpush1.bf16.msra.mxu0 0
    %1311 = vmatprep.subr.bf16.mxu0 0
    %1312 = vmatpush1.bf16.msra.mxu0 0
    %1313 = vmatprep.subr.bf16.mxu0 0
    %1314 = vmatpush1.bf16.msra.mxu0 0
    %1315 = vmatprep.subr.bf16.mxu0 0
    %1316 = vmatpush1.bf16.msra.mxu0 0
    %1317 = vmatprep.subr.bf16.mxu0 0
    %1318 = vmatpush1.bf16.msra.mxu0 0
    %1319 = vmatprep.subr.bf16.mxu0 0
    %1320 = vmatpush1.bf16.msra.mxu0 %v1301
    %1321 = vmatprep.subr.bf16.mxu0 0
    %1322 = vmatpush1.bf16.msra.mxu0 %v1300
    %1323 = vmatprep.subr.bf16.mxu0 0
    %1324 = vmatpush2.bf16.msra.mxu0 0
    %1325 = vmatprep.subr.bf16.mxu0 0
    %1326 = vmatpush2.bf16.msra.mxu0 0
    %1327 = vmatprep.subr.bf16.mxu0 0
    %1328 = vmatpush2.bf16.msra.mxu0 0
    %1329 = vmatprep.subr.bf16.mxu0 0
    %1330 = vmatpush2.bf16.msra.mxu0 0
    %1331 = vmatprep.subr.bf16.mxu0 0
    %1332 = vmatpush2.bf16.msra.mxu0 0
    %1333 = vmatprep.subr.bf16.mxu0 0
    %1334 = vmatpush2.bf16.msra.mxu0 0
    %1335 = vmatprep.subr.bf16.mxu0 0
    %1336 = vmatpush2.bf16.msra.mxu0 0
    %1337 = vmatprep.subr.bf16.mxu0 0
    %1338 = vmatpush2.bf16.msra.mxu0 0
    %1339 = vmatprep.mubr.bf16.mxu0 0
    %1340 = vmatmul.mubr.bf16.gmra.mxu0 %v1305
    %v1341 = vpop.f32.mrf.mxu0
    %v1342 = vadd.f32 0.0, %v1341
    %v1343 = vpop.f32.mrf.mxu0
    %v1344 = vpop.f32.mrf.mxu0
    %v1345 = vadd.f32 0.0, %v1344
    %v1346 = vpop.f32.mrf.mxu0
    %1347 = vdwg.mxu0
    %v1352 = vunpack.c.l.b16 %v1281
    %v1353 = vunpack.c.l.b16 %v1282
    %v1354 = vunpack.c.l.b16 %v1283
    %v1355 = vunpack.c.l.b16 %v1284
    %v1356 = vpack.c.b16 %v1353, %v1352
    %v1357 = vpack.c.b16 %v1355, %v1354
    %v1361 = vsel %vm92, %v1280, 0
    %1363 = vmatprep.subr.bf16.mxu0 0
    %1364 = vmatpush1.bf16.msra.mxu0 0
    %1365 = vmatprep.subr.bf16.mxu0 0
    %1366 = vmatpush1.bf16.msra.mxu0 0
    %1367 = vmatprep.subr.bf16.mxu0 0
    %1368 = vmatpush1.bf16.msra.mxu0 0
    %1369 = vmatprep.subr.bf16.mxu0 0
    %1370 = vmatpush1.bf16.msra.mxu0 0
    %1371 = vmatprep.subr.bf16.mxu0 0
    %1372 = vmatpush1.bf16.msra.mxu0 0
    %1373 = vmatprep.subr.bf16.mxu0 0
    %1374 = vmatpush1.bf16.msra.mxu0 0
    %1375 = vmatprep.subr.bf16.mxu0 0
    %1376 = vmatpush1.bf16.msra.mxu0 %v1357
    %1377 = vmatprep.subr.bf16.mxu0 0
    %1378 = vmatpush1.bf16.msra.mxu0 %v1356
    %1379 = vmatprep.subr.bf16.mxu0 0
    %1380 = vmatpush2.bf16.msra.mxu0 0
    %1381 = vmatprep.subr.bf16.mxu0 0
    %1382 = vmatpush2.bf16.msra.mxu0 0
    %1383 = vmatprep.subr.bf16.mxu0 0
    %1384 = vmatpush2.bf16.msra.mxu0 0
    %1385 = vmatprep.subr.bf16.mxu0 0
    %1386 = vmatpush2.bf16.msra.mxu0 0
    %1387 = vmatprep.subr.bf16.mxu0 0
    %1388 = vmatpush2.bf16.msra.mxu0 0
    %1389 = vmatprep.subr.bf16.mxu0 0
    %1390 = vmatpush2.bf16.msra.mxu0 0
    %1391 = vmatprep.subr.bf16.mxu0 0
    %1392 = vmatpush2.bf16.msra.mxu0 0
    %1393 = vmatprep.subr.bf16.mxu0 0
    %1394 = vmatpush2.bf16.msra.mxu0 0
    %1395 = vmatprep.mubr.bf16.mxu0 0
    %1396 = vmatmul.mubr.bf16.gmra.mxu0 %v1361
    %v1397 = vpop.f32.mrf.mxu0
    %v1398 = vadd.f32 %v1342, %v1397
    %v1399 = vpop.f32.mrf.mxu0
    %v1400 = vpop.f32.mrf.mxu0
    %v1401 = vadd.f32 %v1345, %v1400
    %v1402 = vpop.f32.mrf.mxu0
    %1403 = vdwg.mxu0
    %v1404 = vld [vmem:[#allocation3 + $0xe] sm:$0x3]
    %v1405 = vld [vmem:[#allocation4 + $0xe] sm:$0x3]
    %v1406 = vpack.c.bf16 %v1404, %v1404
    %v1407 = vld [vmem:[%s6] sm:$0xf]
    %v1408 = vld [vmem:[%s6 + $0x4] sm:$0xf]
    %v1409 = vld [vmem:[%s6 + $0x8] sm:$0xf]
    %v1410 = vld [vmem:[%s6 + $0xc] sm:$0xf]
    %v1411 = vpack.c.bf16 %v1405, %v1405
    %v1412 = vld [vmem:[%s7] sm:$0xf]
    %v1413 = vld [vmem:[%s7 + $0x4] sm:$0xf]
    %v1414 = vld [vmem:[%s7 + $0x8] sm:$0xf]
    %v1415 = vld [vmem:[%s7 + $0xc] sm:$0xf]
    %v1420 = vunpack.c.l.b16 %v1412
    %v1421 = vunpack.c.l.b16 %v1413
    %v1422 = vunpack.c.l.b16 %v1414
    %v1423 = vunpack.c.l.b16 %v1415
    %v1424 = vpack.c.b16 %v1421, %v1420
    %v1425 = vpack.c.b16 %v1423, %v1422
    %v1429 = vsel %vm92, %v1411, 0
    %1431 = vmatprep.subr.bf16.mxu0 0
    %1432 = vmatpush1.bf16.msra.mxu0 0
    %1433 = vmatprep.subr.bf16.mxu0 0
    %1434 = vmatpush1.bf16.msra.mxu0 0
    %1435 = vmatprep.subr.bf16.mxu0 0
    %1436 = vmatpush1.bf16.msra.mxu0 0
    %1437 = vmatprep.subr.bf16.mxu0 0
    %1438 = vmatpush1.bf16.msra.mxu0 0
    %1439 = vmatprep.subr.bf16.mxu0 0
    %1440 = vmatpush1.bf16.msra.mxu0 0
    %1441 = vmatprep.subr.bf16.mxu0 0
    %1442 = vmatpush1.bf16.msra.mxu0 0
    %1443 = vmatprep.subr.bf16.mxu0 0
    %1444 = vmatpush1.bf16.msra.mxu0 %v1425
    %1445 = vmatprep.subr.bf16.mxu0 0
    %1446 = vmatpush1.bf16.msra.mxu0 %v1424
    %1447 = vmatprep.subr.bf16.mxu0 0
    %1448 = vmatpush2.bf16.msra.mxu0 0
    %1449 = vmatprep.subr.bf16.mxu0 0
    %1450 = vmatpush2.bf16.msra.mxu0 0
    %1451 = vmatprep.subr.bf16.mxu0 0
    %1452 = vmatpush2.bf16.msra.mxu0 0
    %1453 = vmatprep.subr.bf16.mxu0 0
    %1454 = vmatpush2.bf16.msra.mxu0 0
    %1455 = vmatprep.subr.bf16.mxu0 0
    %1456 = vmatpush2.bf16.msra.mxu0 0
    %1457 = vmatprep.subr.bf16.mxu0 0
    %1458 = vmatpush2.bf16.msra.mxu0 0
    %1459 = vmatprep.subr.bf16.mxu0 0
    %1460 = vmatpush2.bf16.msra.mxu0 0
    %1461 = vmatprep.subr.bf16.mxu0 0
    %1462 = vmatpush2.bf16.msra.mxu0 0
    %1463 = vmatprep.mubr.bf16.mxu0 0
    %1464 = vmatmul.mubr.bf16.gmra.mxu0 %v1429
    %v1465 = vpop.f32.mrf.mxu0
    %v1466 = vadd.f32 0.0, %v1465
    %v1467 = vpop.f32.mrf.mxu0
    %v1468 = vpop.f32.mrf.mxu0
    %v1469 = vpop.f32.mrf.mxu0
    %1470 = vdwg.mxu0
    %v1475 = vunpack.c.l.b16 %v1407
    %v1476 = vunpack.c.l.b16 %v1408
    %v1477 = vunpack.c.l.b16 %v1409
    %v1478 = vunpack.c.l.b16 %v1410
    %v1479 = vpack.c.b16 %v1476, %v1475
    %v1480 = vpack.c.b16 %v1478, %v1477
    %v1484 = vsel %vm92, %v1406, 0
    %1486 = vmatprep.subr.bf16.mxu0 0
    %1487 = vmatpush1.bf16.msra.mxu0 0
    %1488 = vmatprep.subr.bf16.mxu0 0
    %1489 = vmatpush1.bf16.msra.mxu0 0
    %1490 = vmatprep.subr.bf16.mxu0 0
    %1491 = vmatpush1.bf16.msra.mxu0 0
    %1492 = vmatprep.subr.bf16.mxu0 0
    %1493 = vmatpush1.bf16.msra.mxu0 0
    %1494 = vmatprep.subr.bf16.mxu0 0
    %1495 = vmatpush1.bf16.msra.mxu0 0
    %1496 = vmatprep.subr.bf16.mxu0 0
    %1497 = vmatpush1.bf16.msra.mxu0 0
    %1498 = vmatprep.subr.bf16.mxu0 0
    %1499 = vmatpush1.bf16.msra.mxu0 %v1480
    %1500 = vmatprep.subr.bf16.mxu0 0
    %1501 = vmatpush1.bf16.msra.mxu0 %v1479
    %1502 = vmatprep.subr.bf16.mxu0 0
    %1503 = vmatpush2.bf16.msra.mxu0 0
    %1504 = vmatprep.subr.bf16.mxu0 0
    %1505 = vmatpush2.bf16.msra.mxu0 0
    %1506 = vmatprep.subr.bf16.mxu0 0
    %1507 = vmatpush2.bf16.msra.mxu0 0
    %1508 = vmatprep.subr.bf16.mxu0 0
    %1509 = vmatpush2.bf16.msra.mxu0 0
    %1510 = vmatprep.subr.bf16.mxu0 0
    %1511 = vmatpush2.bf16.msra.mxu0 0
    %1512 = vmatprep.subr.bf16.mxu0 0
    %1513 = vmatpush2.bf16.msra.mxu0 0
    %1514 = vmatprep.subr.bf16.mxu0 0
    %1515 = vmatpush2.bf16.msra.mxu0 0
    %1516 = vmatprep.subr.bf16.mxu0 0
    %1517 = vmatpush2.bf16.msra.mxu0 0
    %1518 = vmatprep.mubr.bf16.mxu0 0
    %1519 = vmatmul.mubr.bf16.gmra.mxu0 %v1484
    %v1520 = vpop.f32.mrf.mxu0
    %v1521 = vadd.f32 %v1466, %v1520
    %v1522 = vpop.f32.mrf.mxu0
    %v1523 = vpop.f32.mrf.mxu0
    %v1524 = vpop.f32.mrf.mxu0
    %1525 = vdwg.mxu0
    %v1526 = vadd.f32 %v1398, %v1521
    %v1527 = vtanh.pop %v1526
    %v1528 = vld [vmem:[%s8] sm:$0x1]
    %v1530 = vlaneseq
    %v1531 = vshrl.u32 %v1530, 7
    %v1532 = vsub.s32 0, %v1531
    %v1533 = vrot.slane %v1528, %v1532
    %v1535 = vmul.f32 %v1527, %v1533
    %vm1536 = vcmask 123904
    %v1537 = vsel %vm1536, %v1535, 0.0
    %1538 = vadd.xlane.f32.xlu0 %v1537
    %v1539 = vpop.xlane.xlu0 %1538
    %v1541 = vrot.slane %v1521, 6
    %v1543 = vadd.f32 %v1398, %v1541
    %v1544 = vtanh.pop %v1543
    %v1545 = vmul.f32 %v1544, %v1533
    %vm1546 = vcmask 125954
    %v1547 = vsel %vm1546, %v1545, 0.0
    %1548 = vadd.xlane.f32.xlu0 %v1547
    %v1549 = vpop.xlane.xlu0 %1548
    %v1550 = vrot.slane %v1521, 4
    %v1552 = vadd.f32 %v1398, %v1550
    %v1553 = vtanh.pop %v1552
    %v1554 = vmul.f32 %v1553, %v1533
    %vm1555 = vcmask 128004
    %v1556 = vsel %vm1555, %v1554, 0.0
    %1557 = vadd.xlane.f32.xlu0 %v1556
    %v1558 = vpop.xlane.xlu0 %1557
    %v1559 = vrot.slane %v1521, 2
    %v1561 = vadd.f32 %v1398, %v1559
    %v1562 = vtanh.pop %v1561
    %v1563 = vmul.f32 %v1562, %v1533
    %vm1564 = vcmask 130054
    %v1565 = vsel %vm1564, %v1563, 0.0
    %1566 = vadd.xlane.f32.xlu0 %v1565
    %v1567 = vpop.xlane.xlu0 %1566
    %v1568 = vadd.f32 %v1401, %v1521
    %v1569 = vtanh.pop %v1568
    %v1570 = vmul.f32 %v1569, %v1533
    %v1571 = vsel %vm1536, %v1570, 0.0
    %1572 = vadd.xlane.f32.xlu0 %v1571
    %v1573 = vpop.xlane.xlu0 %1572
    %v1574 = vadd.f32 %v1401, %v1541
    %v1575 = vtanh.pop %v1574
    %v1576 = vmul.f32 %v1575, %v1533
    %v1577 = vsel %vm1546, %v1576, 0.0
    %1578 = vadd.xlane.f32.xlu0 %v1577
    %v1579 = vpop.xlane.xlu0 %1578
    %v1580 = vadd.f32 %v1401, %v1550
    %v1581 = vtanh.pop %v1580
    %v1582 = vmul.f32 %v1581, %v1533
    %v1583 = vsel %vm1555, %v1582, 0.0
    %1584 = vadd.xlane.f32.xlu0 %v1583
    %v1585 = vpop.xlane.xlu0 %1584
    %v1586 = vadd.f32 %v1401, %v1559
    %v1587 = vtanh.pop %v1586
    %v1588 = vmul.f32 %v1587, %v1533
    %v1589 = vsel %vm1564, %v1588, 0.0
    %1590 = vadd.xlane.f32.xlu0 %v1589
    %v1591 = vpop.xlane.xlu0 %1590
    %v1593 = vrot.slane %v1549, 2
    %v1595 = vmax.f32 %v1539, %v1593
    %v1597 = vrot.slane %v1558, 4
    %v1599 = vmax.f32 %v1595, %v1597
    %v1601 = vrot.slane %v1567, 6
    %v1603 = vmax.f32 %v1599, %v1601
    %v1604 = vmax.f32 %v1603, %v1573
    %v1606 = vrot.slane %v1579, 2
    %v1608 = vmax.f32 %v1604, %v1606
    %v1610 = vrot.slane %v1585, 4
    %v1612 = vmax.f32 %v1608, %v1610
    %v1614 = vrot.slane %v1591, 6
    %v1616 = vmax.f32 %v1612, %v1614
    %v1617 = vsub.f32 %v1539, %v1616
    %v1618 = vmul.f32 %v1617, 1.442695
    %v1619 = vpow.pop %v1618
    %v1620 = vadd.f32 %v1619, 0.0
    %v1621 = vld [vmem:[#allocation3] sm:$0x3]
    %1623 = vset.pattern.permute.xlu0 0
    %1624 = vperm.xlu0 %1623, %v1619
    %v1625 = vpop.permute.xlu0 %1624
    %v1627 = vmul.f32 %v1625, %v1621
    %v1628 = vadd.f32 %v1627, 0.0
    %v1629 = vld [vmem:[#allocation4] sm:$0x3]
    %v1630 = vmul.f32 %v1625, %v1629
    %v1631 = vadd.f32 %v1630, 0.0
    %v1633 = vrot.slane %v1616, 6
    %v1635 = vsub.f32 %v1549, %v1633
    %v1636 = vmul.f32 %v1635, 1.442695
    %v1637 = vpow.pop %v1636
    %v1639 = vrot.slane %v1637, 2
    %v1641 = vadd.f32 %v1620, %v1639
    %v1642 = vld [vmem:[#allocation3 + $0x2] sm:$0x3]
    %1643 = vset.pattern.permute.xlu0 0
    %1644 = vperm.xlu0 %1643, %v1637
    %v1645 = vpop.permute.xlu0 %1644
    %v1648 = vrot.slane %v1642, 6
    %v1650 = vmul.f32 %v1645, %v1648
    %v1652 = vrot.slane %v1650, 2
    %v1654 = vadd.f32 %v1628, %v1652
    %v1655 = vld [vmem:[#allocation4 + $0x2] sm:$0x3]
    %v1657 = vrot.slane %v1655, 6
    %v1659 = vmul.f32 %v1645, %v1657
    %v1661 = vrot.slane %v1659, 2
    %v1663 = vadd.f32 %v1631, %v1661
    %v1664 = vrot.slane %v1616, 4
    %v1666 = vsub.f32 %v1558, %v1664
    %v1667 = vmul.f32 %v1666, 1.442695
    %v1668 = vpow.pop %v1667
    %v1670 = vrot.slane %v1668, 4
    %v1672 = vadd.f32 %v1641, %v1670
    %v1673 = vld [vmem:[#allocation3 + $0x4] sm:$0x3]
    %1674 = vset.pattern.permute.xlu0 0
    %1675 = vperm.xlu0 %1674, %v1668
    %v1676 = vpop.permute.xlu0 %1675
    %v1679 = vrot.slane %v1673, 4
    %v1681 = vmul.f32 %v1676, %v1679
    %v1683 = vrot.slane %v1681, 4
    %v1685 = vadd.f32 %v1654, %v1683
    %v1686 = vld [vmem:[#allocation4 + $0x4] sm:$0x3]
    %v1688 = vrot.slane %v1686, 4
    %v1690 = vmul.f32 %v1676, %v1688
    %v1692 = vrot.slane %v1690, 4
    %v1694 = vadd.f32 %v1663, %v1692
    %v1695 = vrot.slane %v1616, 2
    %v1697 = vsub.f32 %v1567, %v1695
    %v1698 = vmul.f32 %v1697, 1.442695
    %v1699 = vpow.pop %v1698
    %v1701 = vrot.slane %v1699, 6
    %v1703 = vadd.f32 %v1672, %v1701
    %v1704 = vld [vmem:[#allocation3 + $0x6] sm:$0x3]
    %1705 = vset.pattern.permute.xlu0 0
    %1706 = vperm.xlu0 %1705, %v1699
    %v1707 = vpop.permute.xlu0 %1706
    %v1710 = vrot.slane %v1704, 2
    %v1712 = vmul.f32 %v1707, %v1710
    %v1714 = vrot.slane %v1712, 6
    %v1716 = vadd.f32 %v1685, %v1714
    %v1717 = vld [vmem:[#allocation4 + $0x6] sm:$0x3]
    %v1719 = vrot.slane %v1717, 2
    %v1721 = vmul.f32 %v1707, %v1719
    %v1723 = vrot.slane %v1721, 6
    %v1725 = vadd.f32 %v1694, %v1723
    %v1726 = vsub.f32 %v1573, %v1616
    %v1727 = vmul.f32 %v1726, 1.442695
    %v1728 = vpow.pop %v1727
    %v1729 = vadd.f32 %v1703, %v1728
    %v1730 = vld [vmem:[#allocation3 + $0x8] sm:$0x3]
    %1732 = vset.pattern.permute.xlu0 0
    %1733 = vperm.xlu0 %1732, %v1728
    %v1734 = vpop.permute.xlu0 %1733
    %v1736 = vmul.f32 %v1734, %v1730
    %v1737 = vadd.f32 %v1716, %v1736
    %v1738 = vld [vmem:[#allocation4 + $0x8] sm:$0x3]
    %v1739 = vmul.f32 %v1734, %v1738
    %v1740 = vadd.f32 %v1725, %v1739
    %v1741 = vsub.f32 %v1579, %v1633
    %v1742 = vmul.f32 %v1741, 1.442695
    %v1743 = vpow.pop %v1742
    %v1745 = vrot.slane %v1743, 2
    %v1747 = vadd.f32 %v1729, %v1745
    %v1748 = vld [vmem:[#allocation3 + $0xa] sm:$0x3]
    %1749 = vset.pattern.permute.xlu0 0
    %1750 = vperm.xlu0 %1749, %v1743
    %v1751 = vpop.permute.xlu0 %1750
    %v1754 = vrot.slane %v1748, 6
    %v1756 = vmul.f32 %v1751, %v1754
    %v1758 = vrot.slane %v1756, 2
    %v1760 = vadd.f32 %v1737, %v1758
    %v1761 = vld [vmem:[#allocation4 + $0xa] sm:$0x3]
    %v1763 = vrot.slane %v1761, 6
    %v1765 = vmul.f32 %v1751, %v1763
    %v1767 = vrot.slane %v1765, 2
    %v1769 = vadd.f32 %v1740, %v1767
    %v1770 = vsub.f32 %v1585, %v1664
    %v1771 = vmul.f32 %v1770, 1.442695
    %v1772 = vpow.pop %v1771
    %v1774 = vrot.slane %v1772, 4
    %v1776 = vadd.f32 %v1747, %v1774
    %v1777 = vld [vmem:[#allocation3 + $0xc] sm:$0x3]
    %1778 = vset.pattern.permute.xlu0 0
    %1779 = vperm.xlu0 %1778, %v1772
    %v1780 = vpop.permute.xlu0 %1779
    %v1783 = vrot.slane %v1777, 4
    %v1785 = vmul.f32 %v1780, %v1783
    %v1787 = vrot.slane %v1785, 4
    %v1789 = vadd.f32 %v1760, %v1787
    %v1790 = vld [vmem:[#allocation4 + $0xc] sm:$0x3]
    %v1792 = vrot.slane %v1790, 4
    %v1794 = vmul.f32 %v1780, %v1792
    %v1796 = vrot.slane %v1794, 4
    %v1798 = vadd.f32 %v1769, %v1796
    %v1799 = vsub.f32 %v1591, %v1695
    %v1800 = vmul.f32 %v1799, 1.442695
    %v1801 = vpow.pop %v1800
    %v1803 = vrot.slane %v1801, 6
    %v1805 = vadd.f32 %v1776, %v1803
    %1806 = vset.pattern.permute.xlu0 0
    %1807 = vperm.xlu0 %1806, %v1801
    %v1808 = vpop.permute.xlu0 %1807
    %v1811 = vrot.slane %v1404, 2
    %v1813 = vmul.f32 %v1808, %v1811
    %v1815 = vrot.slane %v1813, 6
    %v1817 = vadd.f32 %v1789, %v1815
    %v1819 = vrot.slane %v1405, 2
    %v1821 = vmul.f32 %v1808, %v1819
    %v1823 = vrot.slane %v1821, 6
    %v1825 = vadd.f32 %v1798, %v1823
    %v1826 = vrcp.pop %v1805
    %v1827 = vmul.f32 1.0, %v1826
    %1829 = vset.pattern.permute.xlu0 0
    %1830 = vperm.xlu0 %1829, %v1827
    %v1831 = vpop.permute.xlu0 %1830
    %v1833 = vmul.f32 %v1817, %v1831
    %v1834 = vmul.f32 %v1825, %v1831
    %v1835 = vpack.c.bf16 %v1833, %v1833
    %v1836 = vld [vmem:[%s9] sm:$0xf]
    %v1837 = vld [vmem:[%s9 + $0x4] sm:$0xf]
    %v1838 = vld [vmem:[%s9 + $0x8] sm:$0xf]
    %v1839 = vld [vmem:[%s9 + $0xc] sm:$0xf]
    %v1840 = vpack.c.bf16 %v1834, %v1834
    %v1841 = vld [vmem:[%s10] sm:$0xf]
    %v1842 = vld [vmem:[%s10 + $0x4] sm:$0xf]
    %v1843 = vld [vmem:[%s10 + $0x8] sm:$0xf]
    %v1844 = vld [vmem:[%s10 + $0xc] sm:$0xf]
    %v1849 = vunpack.c.l.b16 %v1841
    %v1850 = vunpack.c.l.b16 %v1842
    %v1851 = vunpack.c.l.b16 %v1843
    %v1852 = vunpack.c.l.b16 %v1844
    %v1853 = vpack.c.b16 %v1850, %v1849
    %v1854 = vpack.c.b16 %v1852, %v1851
    %v1858 = vsel %vm92, %v1840, 0
    %1860 = vmatprep.subr.bf16.mxu0 0
    %1861 = vmatpush1.bf16.msra.mxu0 0
    %1862 = vmatprep.subr.bf16.mxu0 0
    %1863 = vmatpush1.bf16.msra.mxu0 0
    %1864 = vmatprep.subr.bf16.mxu0 0
    %1865 = vmatpush1.bf16.msra.mxu0 0
    %1866 = vmatprep.subr.bf16.mxu0 0
    %1867 = vmatpush1.bf16.msra.mxu0 0
    %1868 = vmatprep.subr.bf16.mxu0 0
    %1869 = vmatpush1.bf16.msra.mxu0 0
    %1870 = vmatprep.subr.bf16.mxu0 0
    %1871 = vmatpush1.bf16.msra.mxu0 0
    %1872 = vmatprep.subr.bf16.mxu0 0
    %1873 = vmatpush1.bf16.msra.mxu0 %v1854
    %1874 = vmatprep.subr.bf16.mxu0 0
    %1875 = vmatpush1.bf16.msra.mxu0 %v1853
    %1876 = vmatprep.subr.bf16.mxu0 0
    %1877 = vmatpush2.bf16.msra.mxu0 0
    %1878 = vmatprep.subr.bf16.mxu0 0
    %1879 = vmatpush2.bf16.msra.mxu0 0
    %1880 = vmatprep.subr.bf16.mxu0 0
    %1881 = vmatpush2.bf16.msra.mxu0 0
    %1882 = vmatprep.subr.bf16.mxu0 0
    %1883 = vmatpush2.bf16.msra.mxu0 0
    %1884 = vmatprep.subr.bf16.mxu0 0
    %1885 = vmatpush2.bf16.msra.mxu0 0
    %1886 = vmatprep.subr.bf16.mxu0 0
    %1887 = vmatpush2.bf16.msra.mxu0 0
    %1888 = vmatprep.subr.bf16.mxu0 0
    %1889 = vmatpush2.bf16.msra.mxu0 0
    %1890 = vmatprep.subr.bf16.mxu0 0
    %1891 = vmatpush2.bf16.msra.mxu0 0
    %1892 = vmatprep.mubr.bf16.mxu0 0
    %1893 = vmatmul.mubr.bf16.gmra.mxu0 %v1858
    %v1894 = vpop.f32.mrf.mxu0
    %v1895 = vadd.f32 0.0, %v1894
    %v1896 = vpop.f32.mrf.mxu0
    %v1897 = vpop.f32.mrf.mxu0
    %v1898 = vpop.f32.mrf.mxu0
    %1899 = vdwg.mxu0
    %v1904 = vunpack.c.l.b16 %v1836
    %v1905 = vunpack.c.l.b16 %v1837
    %v1906 = vunpack.c.l.b16 %v1838
    %v1907 = vunpack.c.l.b16 %v1839
    %v1908 = vpack.c.b16 %v1905, %v1904
    %v1909 = vpack.c.b16 %v1907, %v1906
    %v1913 = vsel %vm92, %v1835, 0
    %1915 = vmatprep.subr.bf16.mxu0 0
    %1916 = vmatpush1.bf16.msra.mxu0 0
    %1917 = vmatprep.subr.bf16.mxu0 0
    %1918 = vmatpush1.bf16.msra.mxu0 0
    %1919 = vmatprep.subr.bf16.mxu0 0
    %1920 = vmatpush1.bf16.msra.mxu0 0
    %1921 = vmatprep.subr.bf16.mxu0 0
    %1922 = vmatpush1.bf16.msra.mxu0 0
    %1923 = vmatprep.subr.bf16.mxu0 0
    %1924 = vmatpush1.bf16.msra.mxu0 0
    %1925 = vmatprep.subr.bf16.mxu0 0
    %1926 = vmatpush1.bf16.msra.mxu0 0
    %1927 = vmatprep.subr.bf16.mxu0 0
    %1928 = vmatpush1.bf16.msra.mxu0 %v1909
    %1929 = vmatprep.subr.bf16.mxu0 0
    %1930 = vmatpush1.bf16.msra.mxu0 %v1908
    %1931 = vmatprep.subr.bf16.mxu0 0
    %1932 = vmatpush2.bf16.msra.mxu0 0
    %1933 = vmatprep.subr.bf16.mxu0 0
    %1934 = vmatpush2.bf16.msra.mxu0 0
    %1935 = vmatprep.subr.bf16.mxu0 0
    %1936 = vmatpush2.bf16.msra.mxu0 0
    %1937 = vmatprep.subr.bf16.mxu0 0
    %1938 = vmatpush2.bf16.msra.mxu0 0
    %1939 = vmatprep.subr.bf16.mxu0 0
    %1940 = vmatpush2.bf16.msra.mxu0 0
    %1941 = vmatprep.subr.bf16.mxu0 0
    %1942 = vmatpush2.bf16.msra.mxu0 0
    %1943 = vmatprep.subr.bf16.mxu0 0
    %1944 = vmatpush2.bf16.msra.mxu0 0
    %1945 = vmatprep.subr.bf16.mxu0 0
    %1946 = vmatpush2.bf16.msra.mxu0 0
    %1947 = vmatprep.mubr.bf16.mxu0 0
    %1948 = vmatmul.mubr.bf16.gmra.mxu0 %v1913
    %v1949 = vpop.f32.mrf.mxu0
    %v1950 = vadd.f32 %v1895, %v1949
    %v1951 = vpop.f32.mrf.mxu0
    %v1952 = vpop.f32.mrf.mxu0
    %v1953 = vpop.f32.mrf.mxu0
    %1954 = vdwg.mxu0
    %v1955 = vld [vmem:[%s11] sm:$0x1]
    %v1957 = vlaneseq
    %v1958 = vshrl.u32 %v1957, 7
    %v1959 = vsub.s32 0, %v1958
    %v1960 = vrot.slane %v1955, %v1959
    %v1962 = vadd.f32 %v1950, %v1960
    %v1963 = vtanh.pop %v1962
    %v1964 = vpack.c.bf16 %v1963, %v1963
    %v1965 = vld [vmem:[%s12] sm:$0xf]
    %v1966 = vld [vmem:[%s12 + $0x4] sm:$0xf]
    %v1967 = vld [vmem:[%s12 + $0x8] sm:$0xf]
    %v1968 = vld [vmem:[%s12 + $0xc] sm:$0xf]
    %v1969 = vld [vmem:[%s12 + $0x10] sm:$0xf]
    %v1970 = vld [vmem:[%s12 + $0x14] sm:$0xf]
    %v1971 = vld [vmem:[%s12 + $0x18] sm:$0xf]
    %v1972 = vld [vmem:[%s12 + $0x1c] sm:$0xf]
    %v1973 = vld [vmem:[%s13] sm:$0x1]
    %v1975 = vlaneseq
    %v1976 = vshrl.u32 %v1975, 7
    %v1977 = vsub.s32 0, %v1976
    %v1978 = vrot.slane %v1973, %v1977
    %v1988 = vunpack.c.l.b16 %v1965
    %v1989 = vunpack.c.l.b16 %v1966
    %v1990 = vunpack.c.l.b16 %v1967
    %v1991 = vunpack.c.l.b16 %v1968
    %v1992 = vunpack.c.l.b16 %v1969
    %v1993 = vunpack.c.l.b16 %v1970
    %v1994 = vunpack.c.l.b16 %v1971
    %v1995 = vunpack.c.l.b16 %v1972
    %v1996 = vpack.c.b16 %v1989, %v1988
    %v1997 = vpack.c.b16 %v1991, %v1990
    %v1998 = vpack.c.b16 %v1993, %v1992
    %v1999 = vpack.c.b16 %v1995, %v1994
    %v2005 = vsel %vm193, %v1964, 0
    %2007 = vmatprep.subr.bf16.mxu0 0
    %2008 = vmatpush1.bf16.msra.mxu0 0
    %2009 = vmatprep.subr.bf16.mxu0 0
    %2010 = vmatpush1.bf16.msra.mxu0 0
    %2011 = vmatprep.subr.bf16.mxu0 0
    %2012 = vmatpush1.bf16.msra.mxu0 0
    %2013 = vmatprep.subr.bf16.mxu0 0
    %2014 = vmatpush1.bf16.msra.mxu0 0
    %2015 = vmatprep.subr.bf16.mxu0 0
    %2016 = vmatpush1.bf16.msra.mxu0 %v1999
    %2017 = vmatprep.subr.bf16.mxu0 0
    %2018 = vmatpush1.bf16.msra.mxu0 %v1998
    %2019 = vmatprep.subr.bf16.mxu0 0
    %2020 = vmatpush1.bf16.msra.mxu0 %v1997
    %2021 = vmatprep.subr.bf16.mxu0 0
    %2022 = vmatpush1.bf16.msra.mxu0 %v1996
    %2023 = vmatprep.subr.bf16.mxu0 0
    %2024 = vmatpush2.bf16.msra.mxu0 0
    %2025 = vmatprep.subr.bf16.mxu0 0
    %2026 = vmatpush2.bf16.msra.mxu0 0
    %2027 = vmatprep.subr.bf16.mxu0 0
    %2028 = vmatpush2.bf16.msra.mxu0 0
    %2029 = vmatprep.subr.bf16.mxu0 0
    %2030 = vmatpush2.bf16.msra.mxu0 0
    %2031 = vmatprep.subr.bf16.mxu0 0
    %2032 = vmatpush2.bf16.msra.mxu0 0
    %2033 = vmatprep.subr.bf16.mxu0 0
    %2034 = vmatpush2.bf16.msra.mxu0 0
    %2035 = vmatprep.subr.bf16.mxu0 0
    %2036 = vmatpush2.bf16.msra.mxu0 0
    %2037 = vmatprep.subr.bf16.mxu0 0
    %2038 = vmatpush2.bf16.msra.mxu0 0
    %2039 = vmatprep.mubr.bf16.mxu0 0
    %2040 = vmatmul.mubr.bf16.gmra.mxu0 %v2005
    %v2041 = vpop.f32.mrf.mxu0
    %v2042 = vadd.f32 %v1978, %v2041
    %v2043 = vpop.f32.mrf.mxu0
    %v2044 = vpop.f32.mrf.mxu0
    %v2045 = vpop.f32.mrf.mxu0
    %2046 = vdwg.mxu0
    %vm2047 = vcmask 25600
    %v2048 = vsel %vm2047, %v2042, -inf
    %2049 = vmax.xlane.f32.xlu0 %v2048
    %v2050 = vpop.xlane.xlu0 %2049
    %v2051 = vsub.f32 %v2042, %v2050
    %v2052 = vmul.f32 %v2051, 1.442695
    %v2053 = vpow.pop %v2052
    %v2054 = vsel %vm2047, %v2053, 0.0
    %2055 = vadd.xlane.f32.xlu0 %v2054
    %v2056 = vpop.xlane.xlu0 %2055
    %v2057 = vrcp.pop %v2056
    %v2058 = vmul.f32 %v2053, %v2057
    %2059 = vst.msk [vmem:[#allocation5] sm:$0x3] %vm2047, %v2058
    // Predicated region
    $region58: #{bilstm_baseline_forward.1} parent=1 // pred_check
      _
    $region59: #{bilstm_baseline_forward.1} parent=1 // pred_check_branch
      %2061 = sbr.rel (0) target = $region61
    $region60: #{bilstm_baseline_forward.1} parent=1 // pred_region
      %s2063 = ssub.s32 32, 32
      %2064 = vsyncadd [#allocation6], %s2063
      %s2066 = sshll.u32 [#allocation5], 4
      %s2067 = int_to_ptr.vmem [resolvable:$true] %s2066
      %2069 = dma.vmem_to_hbm [thread:$0]  %s2067, 32, %s14, [#allocation6]
    $region61: #{bilstm_baseline_forward.1} parent=1 // pred_fallthru
      _
    // Predicated region
    $region62: #{bilstm_baseline_forward.1} parent=1 // pred_check
      _
    $region63: #{bilstm_baseline_forward.1} parent=1 // pred_check_branch
      %2071 = sbr.rel (0) target = $region65
    $region64: #{bilstm_baseline_forward.1} parent=1 // pred_region
      %2072 = dma.done [#allocation6], 32
    $region65: #{bilstm_baseline_forward.1} parent=1 // pred_fallthru
      _
    %2073 = vsyncpa [#allocation6], 1

</llo_original>
